<compile_context>
chip_gen: v5e
topology: v5e:2x2
jax: 0.10.0
libtpu: 0.0.40
codegen_flags: <defaults>
</compile_context>

<pallas_src>
import math

import jax
import jax.numpy as jnp
from jax.experimental import pallas as pl
from jax.experimental.pallas import tpu as pltpu

M = 7            # stand-in for wandb.config.M
N = M + 1        # sequence length (Linformer input_size) = 8
C = 5            # channels; nhead=1, dim_d=None -> head dim = 5
DIM_K = 4        # Linformer low-rank projection dim
FEAT = 10        # feature_num
OUT = 2
NC = N * C       # 40 = flattened (seq, chan) feature count, order n*C + c
INV_SQRT_D = 1.0 / math.sqrt(float(C))
LN_EPS = 1e-5


def _pad8(v):
    return ((v + 7) // 8) * 8


# ---- Row layout of the fused stage-1 result: [ q (c-major) | E(K) | F(V) ] ----
Q_OFF = 0                            # rows 0:40   q, row = d*N + n  (d = head channel)
KP_OFF = _pad8(Q_OFF + C * N)        # 40          kp, row = d*DIM_K + j
VP_OFF = _pad8(KP_OFF + C * DIM_K)   # 64          vp, row = d*DIM_K + j
A_ROWS = _pad8(VP_OFF + C * DIM_K)   # 88

# ---- Row layout of packed weight matrix WMAT (all blocks have NC=40 columns) ----
OFF_A = 0                            # fused Kronecker projection matrix (A_ROWS rows)
OFF_WO = OFF_A + A_ROWS              # 88   W_o (c-major in, n-major out), NC rows
OFF_CENT = OFF_WO + NC               # 128  I - mean-over-channels matrix, NC rows
OFF_MU = OFF_CENT + NC               # 168  mean-over-channels matrix, NC rows
OFF_W1 = OFF_MU + NC                 # 208  fc1 weight (FEAT rows)
OFF_W2 = OFF_W1 + _pad8(FEAT)        # 224  fc2 weight (OUT rows, first FEAT cols)
WMAT_ROWS = OFF_W2 + _pad8(OUT)      # 232

# ---- Row layout of packed bias/vector buffer WVEC (single column) ----
OFF_AB = 0                           # biases of the fused stage (q part zero), A_ROWS rows
OFF_WOB = OFF_AB + A_ROWS            # 88   W_o bias, tiled per n
OFF_GAMMA = OFF_WOB + NC             # 128  LayerNorm gamma, tiled per n
OFF_BETA = OFF_GAMMA + NC            # 168  LayerNorm beta, tiled per n
OFF_B1 = OFF_BETA + NC               # 208  fc1 bias
OFF_B2 = OFF_B1 + _pad8(FEAT)        # 224  fc2 bias
WVEC_ROWS = OFF_B2 + _pad8(OUT)      # 232


def dpd_linformer_kernel(x_ref, wmat_ref, wvec_ref, out_ref):
    x = x_ref[...]                      # (NC, TB)  rows ordered n*C + c, lanes = batch
    wm = wmat_ref[...]                  # (WMAT_ROWS, NC)
    wv = wvec_ref[...]                  # (WVEC_ROWS, 1)

    # Stage 1: one fused MXU matmul computes q (c-major) and the Linformer-projected
    # keys/values (to_k/to_v pre-composed with E/F via Kronecker products).
    fused = jnp.dot(wm[OFF_A:OFF_A + A_ROWS, :], x,
                    preferred_element_type=jnp.float32)
    fused = fused + wv[OFF_AB:OFF_AB + A_ROWS, :]                 # (A_ROWS, TB)

    # Stage 2: per-batch attention, vectorized over the lane (batch) axis.
    # q channel block d = rows Q_OFF + d*N : +N ; kp/vp row (d, j) is a single row.
    q_blocks = [fused[Q_OFF + d * N:Q_OFF + (d + 1) * N, :] for d in range(C)]

    scores = []
    for j in range(DIM_K):
        s = q_blocks[0] * fused[KP_OFF + j:KP_OFF + j + 1, :]
        for d in range(1, C):
            r = KP_OFF + d * DIM_K + j
            s = s + q_blocks[d] * fused[r:r + 1, :]
        scores.append(s * INV_SQRT_D)                             # (N, TB)

    m = scores[0]
    for s in scores[1:]:
        m = jnp.maximum(m, s)
    exps = [jnp.exp(s - m) for s in scores]
    denom = exps[0]
    for e in exps[1:]:
        denom = denom + e
    inv = pl.reciprocal(denom, approx=True)                       # EUP slot, frees VALU
    probs = [e * inv for e in exps]                               # softmax over DIM_K

    attn_blocks = []
    for d in range(C):
        r0 = VP_OFF + d * DIM_K
        blk = probs[0] * fused[r0:r0 + 1, :]
        for j in range(1, DIM_K):
            blk = blk + probs[j] * fused[r0 + j:r0 + j + 1, :]
        attn_blocks.append(blk)                                   # (N, TB)
    attn_c = jnp.concatenate(attn_blocks, axis=0)                 # (C*N, TB), rows d*N + n

    # Stage 3: output projection (+bias), residual, LayerNorm over channels.
    z = jnp.dot(wm[OFF_WO:OFF_WO + NC, :], attn_c,
                preferred_element_type=jnp.float32)               # back to rows n*C + c
    y = x + z + wv[OFF_WOB:OFF_WOB + NC, :]
    centered = jnp.dot(wm[OFF_CENT:OFF_CENT + NC, :], y,
                       preferred_element_type=jnp.float32)        # y - mean_c(y)
    var = jnp.dot(wm[OFF_MU:OFF_MU + NC, :], centered * centered,
                  preferred_element_type=jnp.float32)             # mean_c(centered^2)
    ynorm = centered * jax.lax.rsqrt(var + LN_EPS)
    ynorm = ynorm * wv[OFF_GAMMA:OFF_GAMMA + NC, :] + wv[OFF_BETA:OFF_BETA + NC, :]

    # Stage 4: fc1 -> tanh -> fc2; output kept lane-dense as (OUT, TB).
    h = jnp.dot(wm[OFF_W1:OFF_W1 + FEAT, :], ynorm,
                preferred_element_type=jnp.float32) + wv[OFF_B1:OFF_B1 + FEAT, :]
    h = jnp.tanh(h)                                               # (FEAT, TB)
    out = jnp.dot(wm[OFF_W2:OFF_W2 + OUT, :FEAT], h,
                  preferred_element_type=jnp.float32) + wv[OFF_B2:OFF_B2 + OUT, :]
    out_ref[...] = out                                            # (OUT, TB)


def dpd_linformer_forward(x, packed, *, tb=512):
    """x: (B, N, C) float32 -> (B, OUT)."""
    B = x.shape[0]
    x_t = x.reshape(B, NC).T                                      # (NC, B), rows n*C + c
    b_pad = max(tb, pl.cdiv(B, tb) * tb)
    if b_pad != B:
        x_t = jnp.pad(x_t, ((0, 0), (0, b_pad - B)))

    out = pl.pallas_call(
        dpd_linformer_kernel,
        out_shape=jax.ShapeDtypeStruct((OUT, b_pad), jnp.float32),
        grid=(b_pad // tb,),
        in_specs=[
            pl.BlockSpec((NC, tb), lambda i: (0, i)),             # batch-tiled activations
            pl.BlockSpec((WMAT_ROWS, NC), lambda i: (0, 0)),      # packed matrices
            pl.BlockSpec((WVEC_ROWS, 1), lambda i: (0, 0)),       # packed biases/vectors
        ],
        out_specs=pl.BlockSpec((OUT, tb), lambda i: (0, i)),      # lane-dense output slab
        compiler_params=pltpu.CompilerParams(
            dimension_semantics=("parallel",)),
    )(x_t, packed["wmat"], packed["wvec"])
    return out[:, :B].T


def init_params(key):
    """Torch-layout parameters of the DPDlinformer module."""
    ks = jax.random.split(key, 13)
    nrm = lambda k, shape: 0.1 * jax.random.normal(k, shape, jnp.float32)

    wq = nrm(ks[0], (C, C))
    wk = nrm(ks[1], (C, C))
    wv = nrm(ks[2], (C, C))
    e_w = nrm(ks[3], (DIM_K, N)); e_b = nrm(ks[4], (DIM_K,))
    f_w = nrm(ks[5], (DIM_K, N)); f_b = nrm(ks[6], (DIM_K,))
    wo = nrm(ks[7], (C, C));      wo_b = nrm(ks[8], (C,))
    ln_g = jnp.ones((C,), jnp.float32)    # nn.LayerNorm default init
    ln_b = jnp.zeros((C,), jnp.float32)
    fc1_w = nrm(ks[9], (FEAT, NC)); fc1_b = nrm(ks[10], (FEAT,))
    fc2_w = nrm(ks[11], (OUT, FEAT)); fc2_b = nrm(ks[12], (OUT,))

    return dict(
        wq_t=wq.T, wk_t=wk.T, wv_t=wv.T,       # y = x @ w_t
        e_w=e_w, e_b=e_b, f_w=f_w, f_b=f_b,
        wo_t=wo.T, wo_b=wo_b,
        ln_g=ln_g, ln_b=ln_b,
        fc1_w=fc1_w, fc1_b=fc1_b, fc2_w=fc2_w, fc2_b=fc2_b,
    )


def pack_params(p):
    """Pre-compose / pad / pack all weights into two kernel buffers (done once)."""
    eye_n = jnp.eye(N, dtype=jnp.float32)

    # q in c-major rows:   QBIG[d*N + n, m*C + c] = wq_t[c, d] * delta(n, m)
    qbig = jnp.einsum("cd,nm->dnmc", p["wq_t"], eye_n).reshape(C * N, NC)
    # kp = E @ (x Wk):     EKC[d*DIM_K + j, n*C + c'] = e_w[j, n] * wk_t[c', d]
    ekc = jnp.einsum("jn,pd->djnp", p["e_w"], p["wk_t"]).reshape(C * DIM_K, NC)
    # vp = F @ (x Wv)
    fvc = jnp.einsum("jn,pd->djnp", p["f_w"], p["wv_t"]).reshape(C * DIM_K, NC)
    # W_o (c-major in, n-major out): WO[n*C + d, c*N + m] = wo_t[c, d] * delta(n, m)
    wo_big = jnp.einsum("cd,nm->ndcm", p["wo_t"], eye_n).reshape(NC, C * N)
    # LayerNorm helpers (block-diagonal over the sequence position n).
    mu_mat = jnp.kron(eye_n, jnp.full((C, C), 1.0 / C, jnp.float32))
    cent = jnp.eye(NC, dtype=jnp.float32) - mu_mat

    wmat = jnp.zeros((WMAT_ROWS, NC), jnp.float32)
    wmat = wmat.at[OFF_A + Q_OFF:OFF_A + Q_OFF + C * N].set(qbig)
    wmat = wmat.at[OFF_A + KP_OFF:OFF_A + KP_OFF + C * DIM_K].set(ekc)
    wmat = wmat.at[OFF_A + VP_OFF:OFF_A + VP_OFF + C * DIM_K].set(fvc)
    wmat = wmat.at[OFF_WO:OFF_WO + NC].set(wo_big)
    wmat = wmat.at[OFF_CENT:OFF_CENT + NC].set(cent)
    wmat = wmat.at[OFF_MU:OFF_MU + NC].set(mu_mat)
    wmat = wmat.at[OFF_W1:OFF_W1 + FEAT].set(p["fc1_w"])
    wmat = wmat.at[OFF_W2:OFF_W2 + OUT, :FEAT].set(p["fc2_w"])

    wvec = jnp.zeros((WVEC_ROWS, 1), jnp.float32)
    wvec = wvec.at[OFF_AB + KP_OFF:OFF_AB + KP_OFF + C * DIM_K, 0].set(jnp.tile(p["e_b"], C))
    wvec = wvec.at[OFF_AB + VP_OFF:OFF_AB + VP_OFF + C * DIM_K, 0].set(jnp.tile(p["f_b"], C))
    wvec = wvec.at[OFF_WOB:OFF_WOB + NC, 0].set(jnp.tile(p["wo_b"], N))
    wvec = wvec.at[OFF_GAMMA:OFF_GAMMA + NC, 0].set(jnp.tile(p["ln_g"], N))
    wvec = wvec.at[OFF_BETA:OFF_BETA + NC, 0].set(jnp.tile(p["ln_b"], N))
    wvec = wvec.at[OFF_B1:OFF_B1 + FEAT, 0].set(p["fc1_b"])
    wvec = wvec.at[OFF_B2:OFF_B2 + OUT, 0].set(p["fc2_b"])

    return dict(wmat=wmat, wvec=wvec)


def reference_forward(x, p):
    """Plain-JAX reference replicating the PyTorch semantics."""
    q = x @ p["wq_t"]
    k = x @ p["wk_t"]
    v = x @ p["wv_t"]
    kp = jnp.einsum("jn,bnc->bjc", p["e_w"], k) + p["e_b"][None, :, None]
    vp = jnp.einsum("jn,bnc->bjc", p["f_w"], v) + p["f_b"][None, :, None]
    scores = jnp.einsum("bnc,bjc->bnj", q, kp) * INV_SQRT_D
    probs = jax.nn.softmax(scores, axis=-1)
    attn = jnp.einsum("bnj,bjc->bnc", probs, vp)
    attn = attn @ p["wo_t"] + p["wo_b"]
    y = x + attn
    mu = y.mean(-1, keepdims=True)
    var = ((y - mu) ** 2).mean(-1, keepdims=True)
    y = (y - mu) * jax.lax.rsqrt(var + LN_EPS) * p["ln_g"] + p["ln_b"]
    yf = y.reshape(y.shape[0], NC)
    h = jnp.tanh(yf @ p["fc1_w"].T + p["fc1_b"])
    return h @ p["fc2_w"].T + p["fc2_b"]


if __name__ == "__main__":
    key = jax.random.PRNGKey(0)
    k_x, k_p = jax.random.split(key)
    B = 1000                      # exercises batch tiling (TB=512) and padding path
    x = jax.random.normal(k_x, (B, N, C), jnp.float32)

    params = init_params(k_p)
    packed = pack_params(params)

    out = dpd_linformer_forward(x, packed, tb=512)
    out = jax.block_until_ready(out)

    assert out.shape == (B, OUT), out.shape
    ref = reference_forward(x, params)
    if not jnp.allclose(out, ref, atol=2e-2, rtol=2e-2):
        max_err = jnp.max(jnp.abs(out - ref))
        raise AssertionError(f"kernel/ref mismatch, max abs err {max_err}")

    print("KERNEL_OK")
</pallas_src>

<mosaic_0001>
module attributes {stable_mosaic.version = 11 : i64} {
  func.func @dpd_linformer_kernel(%arg0: i32, %arg1: memref<40x512xf32, #tpu.memory_space<vmem>>, %arg2: memref<232x40xf32, #tpu.memory_space<vmem>>, %arg3: memref<232x1xf32, #tpu.memory_space<vmem>>, %arg4: memref<2x512xf32, #tpu.memory_space<vmem>>) attributes {dimension_semantics = [#tpu.dimension_semantics<parallel>], iteration_bounds = array<i64: 2>, scalar_prefetch = 0 : i64, scratch_operands = 0 : i64, tpu.core_type = #tpu.core_type<tc>, window_params = [{transform_indices = @transform_0, window_bounds = array<i64: 40, 512>}, {pipeline_mode = #tpu.pipeline_mode<synchronous>, transform_indices = @transform_1, window_bounds = array<i64: 232, 40>}, {pipeline_mode = #tpu.pipeline_mode<synchronous>, transform_indices = @transform_2, window_bounds = array<i64: 232, 1>}, {transform_indices = @transform_3, window_bounds = array<i64: 2, 512>}]} {
    %c0 = arith.constant 0 : index
    %c0_0 = arith.constant 0 : index
    %0 = vector.load %arg1[%c0, %c0_0] : memref<40x512xf32, #tpu.memory_space<vmem>>, vector<40x512xf32>
    %c0_1 = arith.constant 0 : index
    %c0_2 = arith.constant 0 : index
    %1 = vector.load %arg2[%c0_1, %c0_2] : memref<232x40xf32, #tpu.memory_space<vmem>>, vector<232x40xf32>
    %c0_3 = arith.constant 0 : index
    %c0_4 = arith.constant 0 : index
    %2 = vector.load %arg3[%c0_3, %c0_4] : memref<232x1xf32, #tpu.memory_space<vmem>>, vector<232x1xf32>
    %3 = vector.extract_strided_slice %1 {offsets = [0, 0], sizes = [88, 40], strides = [1, 1]} : vector<232x40xf32> to vector<88x40xf32>
    %cst = arith.constant dense<0.000000e+00> : vector<88x512xf32>
    %4 = tpu.matmul %3, %0, %cst {dimension_numbers = #tpu.dot_dimension_numbers<[1], [0], [0], [1], [0, 0, 1, 1], [], []>} : vector<88x40xf32>, vector<40x512xf32>, vector<88x512xf32> -> vector<88x512xf32>
    %5 = vector.extract_strided_slice %2 {offsets = [0, 0], sizes = [88, 1], strides = [1, 1]} : vector<232x1xf32> to vector<88x1xf32>
    %6 = vector.broadcast %5 : vector<88x1xf32> to vector<88x512xf32>
    %7 = arith.addf %4, %6 : vector<88x512xf32>
    %8 = vector.extract_strided_slice %7 {offsets = [0, 0], sizes = [8, 512], strides = [1, 1]} : vector<88x512xf32> to vector<8x512xf32>
    %9 = vector.extract_strided_slice %7 {offsets = [8, 0], sizes = [8, 512], strides = [1, 1]} : vector<88x512xf32> to vector<8x512xf32>
    %10 = vector.extract_strided_slice %7 {offsets = [16, 0], sizes = [8, 512], strides = [1, 1]} : vector<88x512xf32> to vector<8x512xf32>
    %11 = vector.extract_strided_slice %7 {offsets = [24, 0], sizes = [8, 512], strides = [1, 1]} : vector<88x512xf32> to vector<8x512xf32>
    %12 = vector.extract_strided_slice %7 {offsets = [32, 0], sizes = [8, 512], strides = [1, 1]} : vector<88x512xf32> to vector<8x512xf32>
    %13 = vector.extract_strided_slice %7 {offsets = [40, 0], sizes = [1, 512], strides = [1, 1]} : vector<88x512xf32> to vector<1x512xf32>
    %14 = vector.broadcast %13 : vector<1x512xf32> to vector<8x512xf32>
    %15 = arith.mulf %8, %14 : vector<8x512xf32>
    %16 = vector.extract_strided_slice %7 {offsets = [44, 0], sizes = [1, 512], strides = [1, 1]} : vector<88x512xf32> to vector<1x512xf32>
    %17 = vector.broadcast %16 : vector<1x512xf32> to vector<8x512xf32>
    %18 = arith.mulf %9, %17 : vector<8x512xf32>
    %19 = arith.addf %15, %18 : vector<8x512xf32>
    %20 = vector.extract_strided_slice %7 {offsets = [48, 0], sizes = [1, 512], strides = [1, 1]} : vector<88x512xf32> to vector<1x512xf32>
    %21 = vector.broadcast %20 : vector<1x512xf32> to vector<8x512xf32>
    %22 = arith.mulf %10, %21 : vector<8x512xf32>
    %23 = arith.addf %19, %22 : vector<8x512xf32>
    %24 = vector.extract_strided_slice %7 {offsets = [52, 0], sizes = [1, 512], strides = [1, 1]} : vector<88x512xf32> to vector<1x512xf32>
    %25 = vector.broadcast %24 : vector<1x512xf32> to vector<8x512xf32>
    %26 = arith.mulf %11, %25 : vector<8x512xf32>
    %27 = arith.addf %23, %26 : vector<8x512xf32>
    %28 = vector.extract_strided_slice %7 {offsets = [56, 0], sizes = [1, 512], strides = [1, 1]} : vector<88x512xf32> to vector<1x512xf32>
    %29 = vector.broadcast %28 : vector<1x512xf32> to vector<8x512xf32>
    %30 = arith.mulf %12, %29 : vector<8x512xf32>
    %31 = arith.addf %27, %30 : vector<8x512xf32>
    %cst_5 = arith.constant 0.44721359 : f32
    %32 = vector.broadcast %cst_5 : f32 to vector<8x512xf32>
    %33 = arith.mulf %31, %32 : vector<8x512xf32>
    %34 = vector.extract_strided_slice %7 {offsets = [41, 0], sizes = [1, 512], strides = [1, 1]} : vector<88x512xf32> to vector<1x512xf32>
    %35 = vector.broadcast %34 : vector<1x512xf32> to vector<8x512xf32>
    %36 = arith.mulf %8, %35 : vector<8x512xf32>
    %37 = vector.extract_strided_slice %7 {offsets = [45, 0], sizes = [1, 512], strides = [1, 1]} : vector<88x512xf32> to vector<1x512xf32>
    %38 = vector.broadcast %37 : vector<1x512xf32> to vector<8x512xf32>
    %39 = arith.mulf %9, %38 : vector<8x512xf32>
    %40 = arith.addf %36, %39 : vector<8x512xf32>
    %41 = vector.extract_strided_slice %7 {offsets = [49, 0], sizes = [1, 512], strides = [1, 1]} : vector<88x512xf32> to vector<1x512xf32>
    %42 = vector.broadcast %41 : vector<1x512xf32> to vector<8x512xf32>
    %43 = arith.mulf %10, %42 : vector<8x512xf32>
    %44 = arith.addf %40, %43 : vector<8x512xf32>
    %45 = vector.extract_strided_slice %7 {offsets = [53, 0], sizes = [1, 512], strides = [1, 1]} : vector<88x512xf32> to vector<1x512xf32>
    %46 = vector.broadcast %45 : vector<1x512xf32> to vector<8x512xf32>
    %47 = arith.mulf %11, %46 : vector<8x512xf32>
    %48 = arith.addf %44, %47 : vector<8x512xf32>
    %49 = vector.extract_strided_slice %7 {offsets = [57, 0], sizes = [1, 512], strides = [1, 1]} : vector<88x512xf32> to vector<1x512xf32>
    %50 = vector.broadcast %49 : vector<1x512xf32> to vector<8x512xf32>
    %51 = arith.mulf %12, %50 : vector<8x512xf32>
    %52 = arith.addf %48, %51 : vector<8x512xf32>
    %cst_6 = arith.constant 0.44721359 : f32
    %53 = vector.broadcast %cst_6 : f32 to vector<8x512xf32>
    %54 = arith.mulf %52, %53 : vector<8x512xf32>
    %55 = vector.extract_strided_slice %7 {offsets = [42, 0], sizes = [1, 512], strides = [1, 1]} : vector<88x512xf32> to vector<1x512xf32>
    %56 = vector.broadcast %55 : vector<1x512xf32> to vector<8x512xf32>
    %57 = arith.mulf %8, %56 : vector<8x512xf32>
    %58 = vector.extract_strided_slice %7 {offsets = [46, 0], sizes = [1, 512], strides = [1, 1]} : vector<88x512xf32> to vector<1x512xf32>
    %59 = vector.broadcast %58 : vector<1x512xf32> to vector<8x512xf32>
    %60 = arith.mulf %9, %59 : vector<8x512xf32>
    %61 = arith.addf %57, %60 : vector<8x512xf32>
    %62 = vector.extract_strided_slice %7 {offsets = [50, 0], sizes = [1, 512], strides = [1, 1]} : vector<88x512xf32> to vector<1x512xf32>
    %63 = vector.broadcast %62 : vector<1x512xf32> to vector<8x512xf32>
    %64 = arith.mulf %10, %63 : vector<8x512xf32>
    %65 = arith.addf %61, %64 : vector<8x512xf32>
    %66 = vector.extract_strided_slice %7 {offsets = [54, 0], sizes = [1, 512], strides = [1, 1]} : vector<88x512xf32> to vector<1x512xf32>
    %67 = vector.broadcast %66 : vector<1x512xf32> to vector<8x512xf32>
    %68 = arith.mulf %11, %67 : vector<8x512xf32>
    %69 = arith.addf %65, %68 : vector<8x512xf32>
    %70 = vector.extract_strided_slice %7 {offsets = [58, 0], sizes = [1, 512], strides = [1, 1]} : vector<88x512xf32> to vector<1x512xf32>
    %71 = vector.broadcast %70 : vector<1x512xf32> to vector<8x512xf32>
    %72 = arith.mulf %12, %71 : vector<8x512xf32>
    %73 = arith.addf %69, %72 : vector<8x512xf32>
    %cst_7 = arith.constant 0.44721359 : f32
    %74 = vector.broadcast %cst_7 : f32 to vector<8x512xf32>
    %75 = arith.mulf %73, %74 : vector<8x512xf32>
    %76 = vector.extract_strided_slice %7 {offsets = [43, 0], sizes = [1, 512], strides = [1, 1]} : vector<88x512xf32> to vector<1x512xf32>
    %77 = vector.broadcast %76 : vector<1x512xf32> to vector<8x512xf32>
    %78 = arith.mulf %8, %77 : vector<8x512xf32>
    %79 = vector.extract_strided_slice %7 {offsets = [47, 0], sizes = [1, 512], strides = [1, 1]} : vector<88x512xf32> to vector<1x512xf32>
    %80 = vector.broadcast %79 : vector<1x512xf32> to vector<8x512xf32>
    %81 = arith.mulf %9, %80 : vector<8x512xf32>
    %82 = arith.addf %78, %81 : vector<8x512xf32>
    %83 = vector.extract_strided_slice %7 {offsets = [51, 0], sizes = [1, 512], strides = [1, 1]} : vector<88x512xf32> to vector<1x512xf32>
    %84 = vector.broadcast %83 : vector<1x512xf32> to vector<8x512xf32>
    %85 = arith.mulf %10, %84 : vector<8x512xf32>
    %86 = arith.addf %82, %85 : vector<8x512xf32>
    %87 = vector.extract_strided_slice %7 {offsets = [55, 0], sizes = [1, 512], strides = [1, 1]} : vector<88x512xf32> to vector<1x512xf32>
    %88 = vector.broadcast %87 : vector<1x512xf32> to vector<8x512xf32>
    %89 = arith.mulf %11, %88 : vector<8x512xf32>
    %90 = arith.addf %86, %89 : vector<8x512xf32>
    %91 = vector.extract_strided_slice %7 {offsets = [59, 0], sizes = [1, 512], strides = [1, 1]} : vector<88x512xf32> to vector<1x512xf32>
    %92 = vector.broadcast %91 : vector<1x512xf32> to vector<8x512xf32>
    %93 = arith.mulf %12, %92 : vector<8x512xf32>
    %94 = arith.addf %90, %93 : vector<8x512xf32>
    %cst_8 = arith.constant 0.44721359 : f32
    %95 = vector.broadcast %cst_8 : f32 to vector<8x512xf32>
    %96 = arith.mulf %94, %95 : vector<8x512xf32>
    %97 = arith.maximumf %33, %54 : vector<8x512xf32>
    %98 = arith.maximumf %97, %75 : vector<8x512xf32>
    %99 = arith.maximumf %98, %96 : vector<8x512xf32>
    %100 = arith.subf %33, %99 : vector<8x512xf32>
    %101 = math.exp %100 : vector<8x512xf32>
    %102 = arith.subf %54, %99 : vector<8x512xf32>
    %103 = math.exp %102 : vector<8x512xf32>
    %104 = arith.subf %75, %99 : vector<8x512xf32>
    %105 = math.exp %104 : vector<8x512xf32>
    %106 = arith.subf %96, %99 : vector<8x512xf32>
    %107 = math.exp %106 : vector<8x512xf32>
    %108 = arith.addf %101, %103 : vector<8x512xf32>
    %109 = arith.addf %108, %105 : vector<8x512xf32>
    %110 = arith.addf %109, %107 : vector<8x512xf32>
    %111 = tpu.reciprocal %110 {approx = true} : vector<8x512xf32> -> vector<8x512xf32>
    %112 = arith.mulf %101, %111 : vector<8x512xf32>
    %113 = arith.mulf %103, %111 : vector<8x512xf32>
    %114 = arith.mulf %105, %111 : vector<8x512xf32>
    %115 = arith.mulf %107, %111 : vector<8x512xf32>
    %116 = vector.extract_strided_slice %7 {offsets = [64, 0], sizes = [1, 512], strides = [1, 1]} : vector<88x512xf32> to vector<1x512xf32>
    %117 = vector.broadcast %116 : vector<1x512xf32> to vector<8x512xf32>
    %118 = arith.mulf %112, %117 : vector<8x512xf32>
    %119 = vector.extract_strided_slice %7 {offsets = [65, 0], sizes = [1, 512], strides = [1, 1]} : vector<88x512xf32> to vector<1x512xf32>
    %120 = vector.broadcast %119 : vector<1x512xf32> to vector<8x512xf32>
    %121 = arith.mulf %113, %120 : vector<8x512xf32>
    %122 = arith.addf %118, %121 : vector<8x512xf32>
    %123 = vector.extract_strided_slice %7 {offsets = [66, 0], sizes = [1, 512], strides = [1, 1]} : vector<88x512xf32> to vector<1x512xf32>
    %124 = vector.broadcast %123 : vector<1x512xf32> to vector<8x512xf32>
    %125 = arith.mulf %114, %124 : vector<8x512xf32>
    %126 = arith.addf %122, %125 : vector<8x512xf32>
    %127 = vector.extract_strided_slice %7 {offsets = [67, 0], sizes = [1, 512], strides = [1, 1]} : vector<88x512xf32> to vector<1x512xf32>
    %128 = vector.broadcast %127 : vector<1x512xf32> to vector<8x512xf32>
    %129 = arith.mulf %115, %128 : vector<8x512xf32>
    %130 = arith.addf %126, %129 : vector<8x512xf32>
    %131 = vector.extract_strided_slice %7 {offsets = [68, 0], sizes = [1, 512], strides = [1, 1]} : vector<88x512xf32> to vector<1x512xf32>
    %132 = vector.broadcast %131 : vector<1x512xf32> to vector<8x512xf32>
    %133 = arith.mulf %112, %132 : vector<8x512xf32>
    %134 = vector.extract_strided_slice %7 {offsets = [69, 0], sizes = [1, 512], strides = [1, 1]} : vector<88x512xf32> to vector<1x512xf32>
    %135 = vector.broadcast %134 : vector<1x512xf32> to vector<8x512xf32>
    %136 = arith.mulf %113, %135 : vector<8x512xf32>
    %137 = arith.addf %133, %136 : vector<8x512xf32>
    %138 = vector.extract_strided_slice %7 {offsets = [70, 0], sizes = [1, 512], strides = [1, 1]} : vector<88x512xf32> to vector<1x512xf32>
    %139 = vector.broadcast %138 : vector<1x512xf32> to vector<8x512xf32>
    %140 = arith.mulf %114, %139 : vector<8x512xf32>
    %141 = arith.addf %137, %140 : vector<8x512xf32>
    %142 = vector.extract_strided_slice %7 {offsets = [71, 0], sizes = [1, 512], strides = [1, 1]} : vector<88x512xf32> to vector<1x512xf32>
    %143 = vector.broadcast %142 : vector<1x512xf32> to vector<8x512xf32>
    %144 = arith.mulf %115, %143 : vector<8x512xf32>
    %145 = arith.addf %141, %144 : vector<8x512xf32>
    %146 = vector.extract_strided_slice %7 {offsets = [72, 0], sizes = [1, 512], strides = [1, 1]} : vector<88x512xf32> to vector<1x512xf32>
    %147 = vector.broadcast %146 : vector<1x512xf32> to vector<8x512xf32>
    %148 = arith.mulf %112, %147 : vector<8x512xf32>
    %149 = vector.extract_strided_slice %7 {offsets = [73, 0], sizes = [1, 512], strides = [1, 1]} : vector<88x512xf32> to vector<1x512xf32>
    %150 = vector.broadcast %149 : vector<1x512xf32> to vector<8x512xf32>
    %151 = arith.mulf %113, %150 : vector<8x512xf32>
    %152 = arith.addf %148, %151 : vector<8x512xf32>
    %153 = vector.extract_strided_slice %7 {offsets = [74, 0], sizes = [1, 512], strides = [1, 1]} : vector<88x512xf32> to vector<1x512xf32>
    %154 = vector.broadcast %153 : vector<1x512xf32> to vector<8x512xf32>
    %155 = arith.mulf %114, %154 : vector<8x512xf32>
    %156 = arith.addf %152, %155 : vector<8x512xf32>
    %157 = vector.extract_strided_slice %7 {offsets = [75, 0], sizes = [1, 512], strides = [1, 1]} : vector<88x512xf32> to vector<1x512xf32>
    %158 = vector.broadcast %157 : vector<1x512xf32> to vector<8x512xf32>
    %159 = arith.mulf %115, %158 : vector<8x512xf32>
    %160 = arith.addf %156, %159 : vector<8x512xf32>
    %161 = vector.extract_strided_slice %7 {offsets = [76, 0], sizes = [1, 512], strides = [1, 1]} : vector<88x512xf32> to vector<1x512xf32>
    %162 = vector.broadcast %161 : vector<1x512xf32> to vector<8x512xf32>
    %163 = arith.mulf %112, %162 : vector<8x512xf32>
    %164 = vector.extract_strided_slice %7 {offsets = [77, 0], sizes = [1, 512], strides = [1, 1]} : vector<88x512xf32> to vector<1x512xf32>
    %165 = vector.broadcast %164 : vector<1x512xf32> to vector<8x512xf32>
    %166 = arith.mulf %113, %165 : vector<8x512xf32>
    %167 = arith.addf %163, %166 : vector<8x512xf32>
    %168 = vector.extract_strided_slice %7 {offsets = [78, 0], sizes = [1, 512], strides = [1, 1]} : vector<88x512xf32> to vector<1x512xf32>
    %169 = vector.broadcast %168 : vector<1x512xf32> to vector<8x512xf32>
    %170 = arith.mulf %114, %169 : vector<8x512xf32>
    %171 = arith.addf %167, %170 : vector<8x512xf32>
    %172 = vector.extract_strided_slice %7 {offsets = [79, 0], sizes = [1, 512], strides = [1, 1]} : vector<88x512xf32> to vector<1x512xf32>
    %173 = vector.broadcast %172 : vector<1x512xf32> to vector<8x512xf32>
    %174 = arith.mulf %115, %173 : vector<8x512xf32>
    %175 = arith.addf %171, %174 : vector<8x512xf32>
    %176 = vector.extract_strided_slice %7 {offsets = [80, 0], sizes = [1, 512], strides = [1, 1]} : vector<88x512xf32> to vector<1x512xf32>
    %177 = vector.broadcast %176 : vector<1x512xf32> to vector<8x512xf32>
    %178 = arith.mulf %112, %177 : vector<8x512xf32>
    %179 = vector.extract_strided_slice %7 {offsets = [81, 0], sizes = [1, 512], strides = [1, 1]} : vector<88x512xf32> to vector<1x512xf32>
    %180 = vector.broadcast %179 : vector<1x512xf32> to vector<8x512xf32>
    %181 = arith.mulf %113, %180 : vector<8x512xf32>
    %182 = arith.addf %178, %181 : vector<8x512xf32>
    %183 = vector.extract_strided_slice %7 {offsets = [82, 0], sizes = [1, 512], strides = [1, 1]} : vector<88x512xf32> to vector<1x512xf32>
    %184 = vector.broadcast %183 : vector<1x512xf32> to vector<8x512xf32>
    %185 = arith.mulf %114, %184 : vector<8x512xf32>
    %186 = arith.addf %182, %185 : vector<8x512xf32>
    %187 = vector.extract_strided_slice %7 {offsets = [83, 0], sizes = [1, 512], strides = [1, 1]} : vector<88x512xf32> to vector<1x512xf32>
    %188 = vector.broadcast %187 : vector<1x512xf32> to vector<8x512xf32>
    %189 = arith.mulf %115, %188 : vector<8x512xf32>
    %190 = arith.addf %186, %189 : vector<8x512xf32>
    %191 = tpu.concatenate %130, %145, %160, %175, %190 in 0 : vector<8x512xf32>, vector<8x512xf32>, vector<8x512xf32>, vector<8x512xf32>, vector<8x512xf32> -> vector<40x512xf32>
    %192 = vector.extract_strided_slice %1 {offsets = [88, 0], sizes = [40, 40], strides = [1, 1]} : vector<232x40xf32> to vector<40x40xf32>
    %cst_9 = arith.constant dense<0.000000e+00> : vector<40x512xf32>
    %193 = tpu.matmul %192, %191, %cst_9 {dimension_numbers = #tpu.dot_dimension_numbers<[1], [0], [0], [1], [0, 0, 1, 1], [], []>} : vector<40x40xf32>, vector<40x512xf32>, vector<40x512xf32> -> vector<40x512xf32>
    %194 = arith.addf %0, %193 : vector<40x512xf32>
    %195 = vector.extract_strided_slice %2 {offsets = [88, 0], sizes = [40, 1], strides = [1, 1]} : vector<232x1xf32> to vector<40x1xf32>
    %196 = vector.broadcast %195 : vector<40x1xf32> to vector<40x512xf32>
    %197 = arith.addf %194, %196 : vector<40x512xf32>
    %198 = vector.extract_strided_slice %1 {offsets = [128, 0], sizes = [40, 40], strides = [1, 1]} : vector<232x40xf32> to vector<40x40xf32>
    %cst_10 = arith.constant dense<0.000000e+00> : vector<40x512xf32>
    %199 = tpu.matmul %198, %197, %cst_10 {dimension_numbers = #tpu.dot_dimension_numbers<[1], [0], [0], [1], [0, 0, 1, 1], [], []>} : vector<40x40xf32>, vector<40x512xf32>, vector<40x512xf32> -> vector<40x512xf32>
    %200 = vector.extract_strided_slice %1 {offsets = [168, 0], sizes = [40, 40], strides = [1, 1]} : vector<232x40xf32> to vector<40x40xf32>
    %201 = arith.mulf %199, %199 : vector<40x512xf32>
    %cst_11 = arith.constant dense<0.000000e+00> : vector<40x512xf32>
    %202 = tpu.matmul %200, %201, %cst_11 {dimension_numbers = #tpu.dot_dimension_numbers<[1], [0], [0], [1], [0, 0, 1, 1], [], []>} : vector<40x40xf32>, vector<40x512xf32>, vector<40x512xf32> -> vector<40x512xf32>
    %cst_12 = arith.constant 9.99999974E-6 : f32
    %203 = vector.broadcast %cst_12 : f32 to vector<40x512xf32>
    %204 = arith.addf %202, %203 : vector<40x512xf32>
    %205 = math.rsqrt %204 : vector<40x512xf32>
    %206 = arith.mulf %199, %205 : vector<40x512xf32>
    %207 = vector.extract_strided_slice %2 {offsets = [128, 0], sizes = [40, 1], strides = [1, 1]} : vector<232x1xf32> to vector<40x1xf32>
    %208 = vector.broadcast %207 : vector<40x1xf32> to vector<40x512xf32>
    %209 = arith.mulf %206, %208 : vector<40x512xf32>
    %210 = vector.extract_strided_slice %2 {offsets = [168, 0], sizes = [40, 1], strides = [1, 1]} : vector<232x1xf32> to vector<40x1xf32>
    %211 = vector.broadcast %210 : vector<40x1xf32> to vector<40x512xf32>
    %212 = arith.addf %209, %211 : vector<40x512xf32>
    %213 = vector.extract_strided_slice %1 {offsets = [208, 0], sizes = [10, 40], strides = [1, 1]} : vector<232x40xf32> to vector<10x40xf32>
    %cst_13 = arith.constant dense<0.000000e+00> : vector<10x512xf32>
    %214 = tpu.matmul %213, %212, %cst_13 {dimension_numbers = #tpu.dot_dimension_numbers<[1], [0], [0], [1], [0, 0, 1, 1], [], []>} : vector<10x40xf32>, vector<40x512xf32>, vector<10x512xf32> -> vector<10x512xf32>
    %215 = vector.extract_strided_slice %2 {offsets = [208, 0], sizes = [10, 1], strides = [1, 1]} : vector<232x1xf32> to vector<10x1xf32>
    %216 = vector.broadcast %215 : vector<10x1xf32> to vector<10x512xf32>
    %217 = arith.addf %214, %216 : vector<10x512xf32>
    %218 = math.tanh %217 : vector<10x512xf32>
    %219 = vector.extract_strided_slice %1 {offsets = [224, 0], sizes = [2, 10], strides = [1, 1]} : vector<232x40xf32> to vector<2x10xf32>
    %cst_14 = arith.constant dense<0.000000e+00> : vector<2x512xf32>
    %220 = tpu.matmul %219, %218, %cst_14 {dimension_numbers = #tpu.dot_dimension_numbers<[1], [0], [0], [1], [0, 0, 1, 1], [], []>} : vector<2x10xf32>, vector<10x512xf32>, vector<2x512xf32> -> vector<2x512xf32>
    %221 = vector.extract_strided_slice %2 {offsets = [224, 0], sizes = [2, 1], strides = [1, 1]} : vector<232x1xf32> to vector<2x1xf32>
    %222 = vector.broadcast %221 : vector<2x1xf32> to vector<2x512xf32>
    %223 = arith.addf %220, %222 : vector<2x512xf32>
    %c0_15 = arith.constant 0 : index
    %c0_16 = arith.constant 0 : index
    %224 = vector.load %arg4[%c0_15, %c0_16] : memref<2x512xf32, #tpu.memory_space<vmem>>, vector<2x512xf32>
    tpu.vector_store %arg4[%c0_15, %c0_16], %223 {strides = array<i32>} : memref<2x512xf32, #tpu.memory_space<vmem>>, vector<2x512xf32>,
    return
  }
  func.func @transform_0(%arg0: i32) -> (i32, i32) {
    %c0_i32 = arith.constant 0 : i32
    %c0_i32_0 = arith.constant 0 : i32
    return %c0_i32, %arg0 : i32, i32
  }
  func.func @transform_1(%arg0: i32) -> (i32, i32) {
    %c0_i32 = arith.constant 0 : i32
    %c0_i32_0 = arith.constant 0 : i32
    %c0_i32_1 = arith.constant 0 : i32
    return %c0_i32, %c0_i32_0 : i32, i32
  }
  func.func @transform_2(%arg0: i32) -> (i32, i32) {
    %c0_i32 = arith.constant 0 : i32
    %c0_i32_0 = arith.constant 0 : i32
    %c0_i32_1 = arith.constant 0 : i32
    return %c0_i32, %c0_i32_0 : i32, i32
  }
  func.func @transform_3(%arg0: i32) -> (i32, i32) {
    %c0_i32 = arith.constant 0 : i32
    %c0_i32_0 = arith.constant 0 : i32
    return %c0_i32, %arg0 : i32, i32
  }
}

</mosaic_0001>

<llo_original>
// kernel: tpu_custom_call.1
$region0: #{tpu_custom_call.1}
  #allocation0 [shape = 'u32[]', space=smem, size = 0x4, offset = 0x4, fixed_abs, tag = 'smem constant byte address 0x4 - core index']
  #allocation1 [shape = 'u32[72,128]{1,0:T(1,128)}', space=vmem, size = 0x9000, scoped, tag = 'internal scratch']
  %s0 = inlined_call_operand.vmem [shape: f32[40,1024], index: 0, kind: input, shape index: {}]
  %s1 = inlined_call_operand.vmem [shape: f32[232,40], index: 1, kind: input, shape index: {}]
  %s2 = inlined_call_operand.vmem [shape: f32[232,1], index: 2, kind: input, shape index: {}]
  %s3 = inlined_call_operand.hbm [shape: f32[2,1024], index: 3, kind: output, shape index: {}]
  %s4 = sld [smem:[#allocation0]]
  $region68: #{tpu_custom_call.1} parent=0
    _
  %s6 = ssub.s32 1, %s4
  %s7 = scalar_select 0, %s6, %s4
  $region1: #{tpu_custom_call.1} parent=0
    #allocation2 [shape = 'u8[163840]{0}', space=vmem, size = 0x28000, scoped, tag = 'input window, operand 0']
    #allocation3 [shape = 'u8[8192]{0}', space=vmem, size = 0x2000, scoped, tag = 'output window, operand 0']
    #allocation4 [shape = 's32[2]{0}', space=sflag, size = 0x8, scoped, tag = 'scoped memory for tpu_custom_call.1']
    %8 = vsyncpa [#allocation4], 0
    %s9 = scalar_lea.sflag [#allocation4], 1
    %10 = vsyncpa %s9, 0
    loop: start=0, step=1, limit=4
    $region2: #{tpu_custom_call.1} parent=1 // loop_pre_header
      _
    $region3: #{tpu_custom_call.1} parent=1 // loop_header
      %s12 = sphi 0, %s16
      %p13 = scmp.ge.s32.totalorder %s12, 4
      %s22 = sphi 0, %s24
      %s25 = sphi 0, %s22
      %s26 = sphi 0, %s25
      %s42 = sphi 0, %s26
      %s46 = sphi 0, %s46
      %s48 = sphi 0, %s46
      %s49 = sphi 0, %s48
      %s63 = sphi 0, %s49
      %s67 = sphi 0, %s67
      %s69 = sphi 0, %s67
      %s70 = sphi 0, %s69
      %s84 = sphi 0, %s70
      %s90 = sphi 0, %s92
      %s93 = sphi 0, %s90
      %s94 = sphi 0, %s93
      %s110 = sphi 0, %s94
    $region4: #{tpu_custom_call.1} parent=1 // loop_header_branch
      %15 = sbr.rel (%p13) target = $region8
    $region5: #{tpu_custom_call.1} parent=1 // loop_body
      %s17 = ssub.s32 %s12, 1
      %s18 = ssub.s32 %s12, 2
      %s19 = sadd.s32 %s12, 1
      %s20 = ssub.s32 %s12, %s19
      %p21 = scmp.eq.s32.totalorder %s20, 0
      %s23 = sadd.s32 %s22, 1
      %s24 = scalar_select %p21, %s22, %s23
      %p27 = pneg %p21
      %p28 = scmp.eq.s32.totalorder %s12, 1
      %p29 = por %p27, %p28
      %p30 = scmp.ne.s32.totalorder %s22, %s25
      %p31 = scmp.eq.s32.totalorder %s12, 0
      %p32 = por %p30, %p31
      %p33 = scmp.ne.s32.totalorder %s22, %s25
      %p34 = scmp.eq.s32.totalorder %s17, 1
      %p35 = por %p33, %p34
      %p36 = scmp.ne.s32.totalorder %s25, %s26
      %p37 = scmp.eq.s32.totalorder %s17, 0
      %p38 = por %p36, %p37
      %p39 = scmp.ne.s32.totalorder %s25, %s26
      %p40 = scmp.eq.s32.totalorder %s18, 1
      %p41 = por %p39, %p40
      %p43 = scmp.ne.s32.totalorder %s26, %s42
      %p44 = scmp.eq.s32.totalorder %s18, 0
      %p45 = por %p43, %p44
      %s47 = sadd.s32 %s46, 1
      %p50 = scmp.eq.s32.totalorder %s12, 1
      %p51 = scmp.ne.s32.totalorder %s46, %s48
      %p52 = scmp.eq.s32.totalorder %s12, 0
      %p53 = por %p51, %p52
      %p54 = scmp.ne.s32.totalorder %s46, %s48
      %p55 = scmp.eq.s32.totalorder %s17, 1
      %p56 = por %p54, %p55
      %p57 = scmp.ne.s32.totalorder %s48, %s49
      %p58 = scmp.eq.s32.totalorder %s17, 0
      %p59 = por %p57, %p58
      %p60 = scmp.ne.s32.totalorder %s48, %s49
      %p61 = scmp.eq.s32.totalorder %s18, 1
      %p62 = por %p60, %p61
      %p64 = scmp.ne.s32.totalorder %s49, %s63
      %p65 = scmp.eq.s32.totalorder %s18, 0
      %p66 = por %p64, %p65
      %s68 = sadd.s32 %s67, 1
      %p71 = scmp.eq.s32.totalorder %s12, 1
      %p72 = scmp.ne.s32.totalorder %s67, %s69
      %p73 = scmp.eq.s32.totalorder %s12, 0
      %p74 = por %p72, %p73
      %p75 = scmp.ne.s32.totalorder %s67, %s69
      %p76 = scmp.eq.s32.totalorder %s17, 1
      %p77 = por %p75, %p76
      %p78 = scmp.ne.s32.totalorder %s69, %s70
      %p79 = scmp.eq.s32.totalorder %s17, 0
      %p80 = por %p78, %p79
      %p81 = scmp.ne.s32.totalorder %s69, %s70
      %p82 = scmp.eq.s32.totalorder %s18, 1
      %p83 = por %p81, %p82
      %p85 = scmp.ne.s32.totalorder %s70, %s84
      %p86 = scmp.eq.s32.totalorder %s18, 0
      %p87 = por %p85, %p86
      %s88 = ssub.s32 %s12, %s19
      %p89 = scmp.eq.s32.totalorder %s88, 0
      %s91 = sadd.s32 %s90, 1
      %s92 = scalar_select %p89, %s90, %s91
      %p95 = pneg %p89
      %p96 = scmp.eq.s32.totalorder %s12, 1
      %p97 = por %p95, %p96
      %p98 = scmp.ne.s32.totalorder %s90, %s93
      %p99 = scmp.eq.s32.totalorder %s12, 0
      %p100 = por %p98, %p99
      %p101 = scmp.ne.s32.totalorder %s90, %s93
      %p102 = scmp.eq.s32.totalorder %s17, 1
      %p103 = por %p101, %p102
      %p104 = scmp.ne.s32.totalorder %s93, %s94
      %p105 = scmp.eq.s32.totalorder %s17, 0
      %p106 = por %p104, %p105
      %p107 = scmp.ne.s32.totalorder %s93, %s94
      %p108 = scmp.eq.s32.totalorder %s18, 1
      %p109 = por %p107, %p108
      %p111 = scmp.ne.s32.totalorder %s94, %s110
      %p112 = scmp.eq.s32.totalorder %s18, 0
      %p113 = por %p111, %p112
      %p114 = scmp.le.s32.totalorder 1, %s12
      %p115 = scmp.lt.s32.totalorder %s12, 3
      %p116 = pnand %p114, %p115
      %p117 = pneg %p116
      // Predicated region
      $region9: #{tpu_custom_call.1} parent=5 // pred_check
        _
      $region10: #{tpu_custom_call.1} parent=5 // pred_check_branch
        %119 = sbr.rel (%p116) target = $region12
      $region11: #{tpu_custom_call.1} parent=5 // pred_region
        %s120 = ssub.s32 %s12, 1
        // Predicated region
        $region13: #{tpu_custom_call.1} parent=11 // pred_check
          %p121 = pneg %p59
        $region14: #{tpu_custom_call.1} parent=11 // pred_check_branch
          %123 = sbr.rel (%p121) target = $region16
        $region15: #{tpu_custom_call.1} parent=11 // pred_region
          _
        $region16: #{tpu_custom_call.1} parent=11 // pred_fallthru
          _
        // Predicated region
        $region17: #{tpu_custom_call.1} parent=11 // pred_check
          %p124 = pneg %p80
        $region18: #{tpu_custom_call.1} parent=11 // pred_check_branch
          %126 = sbr.rel (%p124) target = $region20
        $region19: #{tpu_custom_call.1} parent=11 // pred_region
          _
        $region20: #{tpu_custom_call.1} parent=11 // pred_fallthru
          _
      $region12: #{tpu_custom_call.1} parent=5 // pred_fallthru
        _
      %p127 = scmp.lt.s32.totalorder %s12, 2
      // Predicated region
      $region21: #{tpu_custom_call.1} parent=5 // pred_check
        %p128 = pneg %p127
      $region22: #{tpu_custom_call.1} parent=5 // pred_check_branch
        %130 = sbr.rel (%p128) target = $region24
      $region23: #{tpu_custom_call.1} parent=5 // pred_region
        // Predicated region
        $region25: #{tpu_custom_call.1} parent=23 // pred_check
          %p131 = pneg %p32
        $region26: #{tpu_custom_call.1} parent=23 // pred_check_branch
          %133 = sbr.rel (%p131) target = $region28
        $region27: #{tpu_custom_call.1} parent=23 // pred_region
          %s134 = sand.u32 %s22, 1
          %s135 = sand.u32 %s22, 1
          %s136 = smul.addr %s135, 160
          %s137 = scalar_lea.vmem [#allocation2], %s136
          %s138 = smul.u32 4, %s12
          %s139 = smul.addr %s138, 8
          %s140 = scalar_lea.vmem %s0, %s139
          // Predicated region
          $region29: #{tpu_custom_call.1} parent=27 // pred_check
            _
          $region30: #{tpu_custom_call.1} parent=27 // pred_check_branch
            %142 = sbr.rel (0) target = $region32
          $region31: #{tpu_custom_call.1} parent=27 // pred_region
            // Predicated region
            $region33: #{tpu_custom_call.1} parent=31 // pred_check
              _
            $region34: #{tpu_custom_call.1} parent=31 // pred_check_branch
              %144 = sbr.rel (0) target = $region36
            $region35: #{tpu_custom_call.1} parent=31 // pred_region
              loop: start=0, step=1, limit=1
              $region37: #{tpu_custom_call.1} parent=35 // loop_pre_header
                _
              $region38: #{tpu_custom_call.1} parent=35 // loop_header
                %s146 = sphi 0, %s150
                %p147 = scmp.ge.s32.totalorder %s146, 1
                %s151 = sphi %s140, %s140
                %s152 = sphi %s137, %s137
              $region39: #{tpu_custom_call.1} parent=35 // loop_header_branch
                %149 = sbr.rel (%p147) target = $region43
              $region40: #{tpu_custom_call.1} parent=35 // loop_body
                %v153 = vld [vmem:[%s151] sm:$0xff]
                %154 = vst [vmem:[%s152] sm:$0xff] %v153
                %v155 = vld [vmem:[%s151 + $0x8] sm:$0xff]
                %156 = vst [vmem:[%s152 + $0x8] sm:$0xff] %v155
                %v157 = vld [vmem:[%s151 + $0x10] sm:$0xff]
                %158 = vst [vmem:[%s152 + $0x10] sm:$0xff] %v157
                %v159 = vld [vmem:[%s151 + $0x18] sm:$0xff]
                %160 = vst [vmem:[%s152 + $0x18] sm:$0xff] %v159
                %v161 = vld [vmem:[%s151 + $0x40] sm:$0xff]
                %162 = vst [vmem:[%s152 + $0x20] sm:$0xff] %v161
                %v163 = vld [vmem:[%s151 + $0x48] sm:$0xff]
                %164 = vst [vmem:[%s152 + $0x28] sm:$0xff] %v163
                %v165 = vld [vmem:[%s151 + $0x50] sm:$0xff]
                %166 = vst [vmem:[%s152 + $0x30] sm:$0xff] %v165
                %v167 = vld [vmem:[%s151 + $0x58] sm:$0xff]
                %168 = vst [vmem:[%s152 + $0x38] sm:$0xff] %v167
                %v169 = vld [vmem:[%s151 + $0x80] sm:$0xff]
                %170 = vst [vmem:[%s152 + $0x40] sm:$0xff] %v169
                %v171 = vld [vmem:[%s151 + $0x88] sm:$0xff]
                %172 = vst [vmem:[%s152 + $0x48] sm:$0xff] %v171
                %v173 = vld [vmem:[%s151 + $0x90] sm:$0xff]
                %174 = vst [vmem:[%s152 + $0x50] sm:$0xff] %v173
                %v175 = vld [vmem:[%s151 + $0x98] sm:$0xff]
                %176 = vst [vmem:[%s152 + $0x58] sm:$0xff] %v175
                %v177 = vld [vmem:[%s151 + $0xc0] sm:$0xff]
                %178 = vst [vmem:[%s152 + $0x60] sm:$0xff] %v177
                %v179 = vld [vmem:[%s151 + $0xc8] sm:$0xff]
                %180 = vst [vmem:[%s152 + $0x68] sm:$0xff] %v179
                %v181 = vld [vmem:[%s151 + $0xd0] sm:$0xff]
                %182 = vst [vmem:[%s152 + $0x70] sm:$0xff] %v181
                %v183 = vld [vmem:[%s151 + $0xd8] sm:$0xff]
                %184 = vst [vmem:[%s152 + $0x78] sm:$0xff] %v183
                %v185 = vld [vmem:[%s151 + $0x100] sm:$0xff]
                %186 = vst [vmem:[%s152 + $0x80] sm:$0xff] %v185
                %v187 = vld [vmem:[%s151 + $0x108] sm:$0xff]
                %188 = vst [vmem:[%s152 + $0x88] sm:$0xff] %v187
                %v189 = vld [vmem:[%s151 + $0x110] sm:$0xff]
                %190 = vst [vmem:[%s152 + $0x90] sm:$0xff] %v189
                %v191 = vld [vmem:[%s151 + $0x118] sm:$0xff]
                %192 = vst [vmem:[%s152 + $0x98] sm:$0xff] %v191
              $region41: #{tpu_custom_call.1} parent=35 // loop_footer
                %s150 = sadd.s32 1, %s146
              $region42: #{tpu_custom_call.1} parent=35 // loop_footer_branch
                %145 = sbr.rel target = $region38
              $region43: #{tpu_custom_call.1} parent=35 // loop_exit
                _
            $region36: #{tpu_custom_call.1} parent=31 // pred_fallthru
              _
            // Predicated region
            $region44: #{tpu_custom_call.1} parent=31 // pred_check
              _
            $region45: #{tpu_custom_call.1} parent=31 // pred_check_branch
              %194 = sbr.rel target = $region47
            $region46: #{tpu_custom_call.1} parent=31 // pred_region
              _
            $region47: #{tpu_custom_call.1} parent=31 // pred_fallthru
              _
          $region32: #{tpu_custom_call.1} parent=27 // pred_fallthru
            _
          %195 = vnop
        $region28: #{tpu_custom_call.1} parent=23 // pred_fallthru
          _
      $region24: #{tpu_custom_call.1} parent=5 // pred_fallthru
        _
      %p196 = scmp.le.s32.totalorder 1, %s12
      %p197 = scmp.lt.s32.totalorder %s12, 3
      %p198 = pnand %p196, %p197
      %p199 = pneg %p198
      // Predicated region
      $region48: #{tpu_custom_call.1} parent=5 // pred_check
        _
      $region49: #{tpu_custom_call.1} parent=5 // pred_check_branch
        %201 = sbr.rel (%p198) target = $region51
      $region50: #{tpu_custom_call.1} parent=5 // pred_region
        %s202 = ssub.s32 %s12, 1
        %s203 = sand.u32 %s25, 1
        %s204 = sand.u32 %s25, 1
        %s205 = smul.addr %s204, 160
        %s206 = scalar_lea.vmem [#allocation2], %s205
        // Predicated region
        $region52: #{tpu_custom_call.1} parent=50 // pred_check
          %p207 = pneg %p38
        $region53: #{tpu_custom_call.1} parent=50 // pred_check_branch
          %209 = sbr.rel (%p207) target = $region55
        $region54: #{tpu_custom_call.1} parent=50 // pred_region
          _
        $region55: #{tpu_custom_call.1} parent=50 // pred_fallthru
          _
        %s210 = sand.u32 %s25, 1
        %s211 = sand.u32 %s25, 1
        %s212 = smul.addr %s211, 160
        %s213 = scalar_lea.vmem [#allocation2], %s212
        %p214 = pneg %p38
        %p215 = pneg %p35
        %p216 = pneg %p59
        %p217 = pneg %p56
        %p218 = pneg %p80
        %p219 = pneg %p77
        %p220 = pneg %p106
        %p221 = pneg %p103
        %s222 = sand.u32 %s93, 1
        %s223 = scalar_lea.sflag [#allocation4], %s222
        %s224 = sand.u32 %s93, 1
        %s225 = smul.addr %s224, 8
        %s226 = scalar_lea.vmem [#allocation3], %s225
        %s227 = smul.u32 4, %s17
        %s228 = smul.u32 4, %s17
        %v229 = vld [vmem:[%s206] sm:$0xff]
        %v230 = vld [vmem:[%s206 + $0x8] sm:$0xff]
        %v231 = vld [vmem:[%s206 + $0x10] sm:$0xff]
        %v232 = vld [vmem:[%s206 + $0x18] sm:$0xff]
        %v233 = vld [vmem:[%s206 + $0x20] sm:$0xff]
        %v234 = vld [vmem:[%s206 + $0x28] sm:$0xff]
        %v235 = vld [vmem:[%s206 + $0x30] sm:$0xff]
        %v236 = vld [vmem:[%s206 + $0x38] sm:$0xff]
        %v237 = vld [vmem:[%s206 + $0x40] sm:$0xff]
        %v238 = vld [vmem:[%s206 + $0x48] sm:$0xff]
        %v239 = vld [vmem:[%s206 + $0x50] sm:$0xff]
        %v240 = vld [vmem:[%s206 + $0x58] sm:$0xff]
        %v241 = vld [vmem:[%s206 + $0x60] sm:$0xff]
        %v242 = vld [vmem:[%s206 + $0x68] sm:$0xff]
        %v243 = vld [vmem:[%s206 + $0x70] sm:$0xff]
        %v244 = vld [vmem:[%s206 + $0x78] sm:$0xff]
        %v245 = vld [vmem:[%s206 + $0x80] sm:$0xff]
        %v246 = vld [vmem:[%s206 + $0x88] sm:$0xff]
        %v247 = vld [vmem:[%s206 + $0x90] sm:$0xff]
        %v248 = vld [vmem:[%s206 + $0x98] sm:$0xff]
        %v249 = vld [vmem:[%s1] sm:$0xff]
        %v250 = vld [vmem:[%s1 + $0x8] sm:$0xff]
        %v251 = vld [vmem:[%s1 + $0x10] sm:$0xff]
        %v252 = vld [vmem:[%s1 + $0x18] sm:$0xff]
        %v253 = vld [vmem:[%s1 + $0x20] sm:$0xff]
        %v254 = vld [vmem:[%s1 + $0x28] sm:$0xff]
        %v255 = vld [vmem:[%s1 + $0x30] sm:$0xff]
        %v256 = vld [vmem:[%s1 + $0x38] sm:$0xff]
        %v257 = vld [vmem:[%s1 + $0x40] sm:$0xff]
        %v258 = vld [vmem:[%s1 + $0x48] sm:$0xff]
        %v259 = vld [vmem:[%s1 + $0x50] sm:$0xff]
        %v260 = vld [vmem:[%s1 + $0x58] sm:$0xff]
        %v261 = vld [vmem:[%s1 + $0x60] sm:$0xff]
        %v262 = vld [vmem:[%s1 + $0x68] sm:$0xff]
        %v263 = vld [vmem:[%s1 + $0x70] sm:$0xff]
        %v264 = vld [vmem:[%s1 + $0x78] sm:$0xff]
        %v265 = vld [vmem:[%s1 + $0x80] sm:$0xff]
        %v266 = vld [vmem:[%s1 + $0x88] sm:$0xff]
        %v267 = vld [vmem:[%s1 + $0x90] sm:$0xff]
        %v268 = vld [vmem:[%s1 + $0x98] sm:$0xff]
        %v269 = vld [vmem:[%s1 + $0xa0] sm:$0xff]
        %v270 = vld [vmem:[%s1 + $0xa8] sm:$0xff]
        %v271 = vld [vmem:[%s1 + $0xb0] sm:$0xff]
        %v272 = vld [vmem:[%s1 + $0xb8] sm:$0xff]
        %v273 = vld [vmem:[%s1 + $0xc0] sm:$0xff]
        %v274 = vld [vmem:[%s1 + $0xc8] sm:$0xff]
        %v275 = vld [vmem:[%s1 + $0xd0] sm:$0xff]
        %v276 = vld [vmem:[%s1 + $0xd8] sm:$0xff]
        %v277 = vld [vmem:[%s1 + $0xe0] sm:$0xff]
        %v278 = vld [vmem:[%s2] sm:$0xff]
        %v279 = vld [vmem:[%s2 + $0x8] sm:$0xff]
        %v280 = vld [vmem:[%s2 + $0x10] sm:$0xff]
        %v281 = vld [vmem:[%s2 + $0x18] sm:$0xff]
        %v282 = vld [vmem:[%s2 + $0x20] sm:$0xff]
        %v283 = vld [vmem:[%s2 + $0x28] sm:$0xff]
        %v284 = vld [vmem:[%s2 + $0x30] sm:$0xff]
        %v285 = vld [vmem:[%s2 + $0x38] sm:$0xff]
        %v286 = vld [vmem:[%s2 + $0x40] sm:$0xff]
        %v287 = vld [vmem:[%s2 + $0x48] sm:$0xff]
        %v288 = vld [vmem:[%s2 + $0x50] sm:$0xff]
        %v289 = vld [vmem:[%s2 + $0x58] sm:$0xff]
        %v290 = vld [vmem:[%s2 + $0x60] sm:$0xff]
        %v291 = vld [vmem:[%s2 + $0x68] sm:$0xff]
        %v292 = vld [vmem:[%s2 + $0x70] sm:$0xff]
        %v293 = vld [vmem:[%s2 + $0x78] sm:$0xff]
        %v294 = vld [vmem:[%s2 + $0x80] sm:$0xff]
        %v295 = vld [vmem:[%s2 + $0x88] sm:$0xff]
        %v296 = vld [vmem:[%s2 + $0x90] sm:$0xff]
        %v297 = vld [vmem:[%s2 + $0x98] sm:$0xff]
        %v298 = vld [vmem:[%s2 + $0xa0] sm:$0xff]
        %v299 = vld [vmem:[%s2 + $0xa8] sm:$0xff]
        %v300 = vld [vmem:[%s2 + $0xb0] sm:$0xff]
        %v301 = vld [vmem:[%s2 + $0xb8] sm:$0xff]
        %v302 = vld [vmem:[%s2 + $0xc0] sm:$0xff]
        %v303 = vld [vmem:[%s2 + $0xc8] sm:$0xff]
        %v304 = vld [vmem:[%s2 + $0xd0] sm:$0xff]
        %v305 = vld [vmem:[%s2 + $0xd8] sm:$0xff]
        %v306 = vld [vmem:[%s2 + $0xe0] sm:$0xff]
        %308 = vset.pattern.permute.xlu0 0
        %309 = vperm.xlu0 %308, %v278
        %v310 = vpop.permute.xlu0 %309
        %313 = vset.pattern.permute.xlu0 0
        %314 = vperm.xlu0 %313, %v279
        %v315 = vpop.permute.xlu0 %314
        %318 = vset.pattern.permute.xlu0 0
        %319 = vperm.xlu0 %318, %v280
        %v320 = vpop.permute.xlu0 %319
        %323 = vset.pattern.permute.xlu0 0
        %324 = vperm.xlu0 %323, %v281
        %v325 = vpop.permute.xlu0 %324
        %328 = vset.pattern.permute.xlu0 0
        %329 = vperm.xlu0 %328, %v282
        %v330 = vpop.permute.xlu0 %329
        %333 = vset.pattern.permute.xlu0 0
        %334 = vperm.xlu0 %333, %v283
        %v335 = vpop.permute.xlu0 %334
        %338 = vset.pattern.permute.xlu0 0
        %339 = vperm.xlu0 %338, %v284
        %v340 = vpop.permute.xlu0 %339
        %343 = vset.pattern.permute.xlu0 0
        %344 = vperm.xlu0 %343, %v285
        %v345 = vpop.permute.xlu0 %344
        %348 = vset.pattern.permute.xlu0 0
        %349 = vperm.xlu0 %348, %v286
        %v350 = vpop.permute.xlu0 %349
        %353 = vset.pattern.permute.xlu0 0
        %354 = vperm.xlu0 %353, %v287
        %v355 = vpop.permute.xlu0 %354
        %358 = vset.pattern.permute.xlu0 0
        %359 = vperm.xlu0 %358, %v288
        %v360 = vpop.permute.xlu0 %359
        %vm362 = vcmask 326656
        %v364 = vsel %vm362, %v249, 0
        %v367 = vsel %vm362, %v250, 0
        %v370 = vsel %vm362, %v251, 0
        %v373 = vsel %vm362, %v252, 0
        %v376 = vsel %vm362, %v253, 0
        %v379 = vsel %vm362, %v254, 0
        %v382 = vsel %vm362, %v255, 0
        %v385 = vsel %vm362, %v256, 0
        %v388 = vsel %vm362, %v257, 0
        %v391 = vsel %vm362, %v258, 0
        %v394 = vsel %vm362, %v259, 0
        %396 = vmatpush.msra.mxu0 0.0
        %397 = vmatpush.msra.mxu0 0.0
        %398 = vmatpush.msra.mxu0 0.0
        %399 = vmatpush.msra.mxu0 0.0
        %400 = vmatpush.msra.mxu0 0.0
        %401 = vmatpush.msra.mxu0 0.0
        %402 = vmatpush.msra.mxu0 0.0
        %403 = vmatpush.msra.mxu0 0.0
        %404 = vmatpush.msra.mxu0 0.0
        %405 = vmatpush.msra.mxu0 0.0
        %406 = vmatpush.msra.mxu0 0.0
        %407 = vmatpush.msra.mxu0 %v245
        %408 = vmatpush.msra.mxu0 %v241
        %409 = vmatpush.msra.mxu0 %v237
        %410 = vmatpush.msra.mxu0 %v233
        %411 = vmatpush.msra.mxu0 %v229
        %412 = vmatmul.f32.gmra.mxu0 %v364
        %v413 = vpop.f32.mrf.mxu0
        %v414 = vadd.f32 %v310, %v413
        %415 = vmatmul.f32.gmra.mxu0 %v367
        %v416 = vpop.f32.mrf.mxu0
        %v417 = vadd.f32 %v315, %v416
        %418 = vmatmul.f32.gmra.mxu0 %v370
        %v419 = vpop.f32.mrf.mxu0
        %v420 = vadd.f32 %v320, %v419
        %421 = vmatmul.f32.gmra.mxu0 %v373
        %v422 = vpop.f32.mrf.mxu0
        %v423 = vadd.f32 %v325, %v422
        %424 = vmatmul.f32.gmra.mxu0 %v376
        %v425 = vpop.f32.mrf.mxu0
        %v426 = vadd.f32 %v330, %v425
        %427 = vmatmul.f32.gmra.mxu0 %v379
        %v428 = vpop.f32.mrf.mxu0
        %v429 = vadd.f32 %v335, %v428
        %430 = vmatmul.f32.gmra.mxu0 %v382
        %v431 = vpop.f32.mrf.mxu0
        %v432 = vadd.f32 %v340, %v431
        %433 = vmatmul.f32.gmra.mxu0 %v385
        %v434 = vpop.f32.mrf.mxu0
        %v435 = vadd.f32 %v345, %v434
        %436 = vmatmul.f32.gmra.mxu0 %v388
        %v437 = vpop.f32.mrf.mxu0
        %v438 = vadd.f32 %v350, %v437
        %439 = vmatmul.f32.gmra.mxu0 %v391
        %v440 = vpop.f32.mrf.mxu0
        %v441 = vadd.f32 %v355, %v440
        %442 = vmatmul.f32.gmra.mxu0 %v394
        %v443 = vpop.f32.mrf.mxu0
        %v444 = vadd.f32 %v360, %v443
        %445 = vdwg.mxu0
        %446 = vmatpush.msra.mxu0 0.0
        %447 = vmatpush.msra.mxu0 0.0
        %448 = vmatpush.msra.mxu0 0.0
        %449 = vmatpush.msra.mxu0 0.0
        %450 = vmatpush.msra.mxu0 0.0
        %451 = vmatpush.msra.mxu0 0.0
        %452 = vmatpush.msra.mxu0 0.0
        %453 = vmatpush.msra.mxu0 0.0
        %454 = vmatpush.msra.mxu0 0.0
        %455 = vmatpush.msra.mxu0 0.0
        %456 = vmatpush.msra.mxu0 0.0
        %457 = vmatpush.msra.mxu0 %v246
        %458 = vmatpush.msra.mxu0 %v242
        %459 = vmatpush.msra.mxu0 %v238
        %460 = vmatpush.msra.mxu0 %v234
        %461 = vmatpush.msra.mxu0 %v230
        %462 = vmatmul.f32.gmra.mxu0 %v364
        %v463 = vpop.f32.mrf.mxu0
        %v464 = vadd.f32 %v310, %v463
        %465 = vmatmul.f32.gmra.mxu0 %v367
        %v466 = vpop.f32.mrf.mxu0
        %v467 = vadd.f32 %v315, %v466
        %468 = vmatmul.f32.gmra.mxu0 %v370
        %v469 = vpop.f32.mrf.mxu0
        %v470 = vadd.f32 %v320, %v469
        %471 = vmatmul.f32.gmra.mxu0 %v373
        %v472 = vpop.f32.mrf.mxu0
        %v473 = vadd.f32 %v325, %v472
        %474 = vmatmul.f32.gmra.mxu0 %v376
        %v475 = vpop.f32.mrf.mxu0
        %v476 = vadd.f32 %v330, %v475
        %477 = vmatmul.f32.gmra.mxu0 %v379
        %v478 = vpop.f32.mrf.mxu0
        %v479 = vadd.f32 %v335, %v478
        %480 = vmatmul.f32.gmra.mxu0 %v382
        %v481 = vpop.f32.mrf.mxu0
        %v482 = vadd.f32 %v340, %v481
        %483 = vmatmul.f32.gmra.mxu0 %v385
        %v484 = vpop.f32.mrf.mxu0
        %v485 = vadd.f32 %v345, %v484
        %486 = vmatmul.f32.gmra.mxu0 %v388
        %v487 = vpop.f32.mrf.mxu0
        %v488 = vadd.f32 %v350, %v487
        %489 = vmatmul.f32.gmra.mxu0 %v391
        %v490 = vpop.f32.mrf.mxu0
        %v491 = vadd.f32 %v355, %v490
        %492 = vmatmul.f32.gmra.mxu0 %v394
        %v493 = vpop.f32.mrf.mxu0
        %v494 = vadd.f32 %v360, %v493
        %495 = vdwg.mxu0
        %496 = vmatpush.msra.mxu0 0.0
        %497 = vmatpush.msra.mxu0 0.0
        %498 = vmatpush.msra.mxu0 0.0
        %499 = vmatpush.msra.mxu0 0.0
        %500 = vmatpush.msra.mxu0 0.0
        %501 = vmatpush.msra.mxu0 0.0
        %502 = vmatpush.msra.mxu0 0.0
        %503 = vmatpush.msra.mxu0 0.0
        %504 = vmatpush.msra.mxu0 0.0
        %505 = vmatpush.msra.mxu0 0.0
        %506 = vmatpush.msra.mxu0 0.0
        %507 = vmatpush.msra.mxu0 %v247
        %508 = vmatpush.msra.mxu0 %v243
        %509 = vmatpush.msra.mxu0 %v239
        %510 = vmatpush.msra.mxu0 %v235
        %511 = vmatpush.msra.mxu0 %v231
        %512 = vmatmul.f32.gmra.mxu0 %v364
        %v513 = vpop.f32.mrf.mxu0
        %v514 = vadd.f32 %v310, %v513
        %515 = vmatmul.f32.gmra.mxu0 %v367
        %v516 = vpop.f32.mrf.mxu0
        %v517 = vadd.f32 %v315, %v516
        %518 = vmatmul.f32.gmra.mxu0 %v370
        %v519 = vpop.f32.mrf.mxu0
        %v520 = vadd.f32 %v320, %v519
        %521 = vmatmul.f32.gmra.mxu0 %v373
        %v522 = vpop.f32.mrf.mxu0
        %v523 = vadd.f32 %v325, %v522
        %524 = vmatmul.f32.gmra.mxu0 %v376
        %v525 = vpop.f32.mrf.mxu0
        %v526 = vadd.f32 %v330, %v525
        %527 = vmatmul.f32.gmra.mxu0 %v379
        %v528 = vpop.f32.mrf.mxu0
        %v529 = vadd.f32 %v335, %v528
        %530 = vmatmul.f32.gmra.mxu0 %v382
        %v531 = vpop.f32.mrf.mxu0
        %v532 = vadd.f32 %v340, %v531
        %533 = vmatmul.f32.gmra.mxu0 %v385
        %v534 = vpop.f32.mrf.mxu0
        %v535 = vadd.f32 %v345, %v534
        %536 = vmatmul.f32.gmra.mxu0 %v388
        %v537 = vpop.f32.mrf.mxu0
        %v538 = vadd.f32 %v350, %v537
        %539 = vmatmul.f32.gmra.mxu0 %v391
        %v540 = vpop.f32.mrf.mxu0
        %v541 = vadd.f32 %v355, %v540
        %542 = vmatmul.f32.gmra.mxu0 %v394
        %v543 = vpop.f32.mrf.mxu0
        %v544 = vadd.f32 %v360, %v543
        %545 = vdwg.mxu0
        %546 = vmatpush.msra.mxu0 0.0
        %547 = vmatpush.msra.mxu0 0.0
        %548 = vmatpush.msra.mxu0 0.0
        %549 = vmatpush.msra.mxu0 0.0
        %550 = vmatpush.msra.mxu0 0.0
        %551 = vmatpush.msra.mxu0 0.0
        %552 = vmatpush.msra.mxu0 0.0
        %553 = vmatpush.msra.mxu0 0.0
        %554 = vmatpush.msra.mxu0 0.0
        %555 = vmatpush.msra.mxu0 0.0
        %556 = vmatpush.msra.mxu0 0.0
        %557 = vmatpush.msra.mxu0 %v248
        %558 = vmatpush.msra.mxu0 %v244
        %559 = vmatpush.msra.mxu0 %v240
        %560 = vmatpush.msra.mxu0 %v236
        %561 = vmatpush.msra.mxu0 %v232
        %562 = vmatmul.f32.gmra.mxu0 %v364
        %v563 = vpop.f32.mrf.mxu0
        %v564 = vadd.f32 %v310, %v563
        %565 = vmatmul.f32.gmra.mxu0 %v367
        %v566 = vpop.f32.mrf.mxu0
        %v567 = vadd.f32 %v315, %v566
        %568 = vmatmul.f32.gmra.mxu0 %v370
        %v569 = vpop.f32.mrf.mxu0
        %v570 = vadd.f32 %v320, %v569
        %571 = vmatmul.f32.gmra.mxu0 %v373
        %v572 = vpop.f32.mrf.mxu0
        %v573 = vadd.f32 %v325, %v572
        %574 = vmatmul.f32.gmra.mxu0 %v376
        %v575 = vpop.f32.mrf.mxu0
        %v576 = vadd.f32 %v330, %v575
        %577 = vmatmul.f32.gmra.mxu0 %v379
        %v578 = vpop.f32.mrf.mxu0
        %v579 = vadd.f32 %v335, %v578
        %580 = vmatmul.f32.gmra.mxu0 %v382
        %v581 = vpop.f32.mrf.mxu0
        %v582 = vadd.f32 %v340, %v581
        %583 = vmatmul.f32.gmra.mxu0 %v385
        %v584 = vpop.f32.mrf.mxu0
        %v585 = vadd.f32 %v345, %v584
        %586 = vmatmul.f32.gmra.mxu0 %v388
        %v587 = vpop.f32.mrf.mxu0
        %v588 = vadd.f32 %v350, %v587
        %589 = vmatmul.f32.gmra.mxu0 %v391
        %v590 = vpop.f32.mrf.mxu0
        %v591 = vadd.f32 %v355, %v590
        %592 = vmatmul.f32.gmra.mxu0 %v394
        %v593 = vpop.f32.mrf.mxu0
        %v594 = vadd.f32 %v360, %v593
        %595 = vdwg.mxu0
        %v596 = vperm.slane %v429, 0
        %v597 = vperm.slane %v479, 0
        %v598 = vperm.slane %v529, 0
        %v599 = vperm.slane %v579, 0
        %v600 = vmul.f32 %v414, %v596
        %v601 = vmul.f32 %v464, %v597
        %v602 = vmul.f32 %v514, %v598
        %v603 = vmul.f32 %v564, %v599
        %v604 = vperm.slane %v429, 4
        %v605 = vperm.slane %v479, 4
        %v606 = vperm.slane %v529, 4
        %v607 = vperm.slane %v579, 4
        %v608 = vmul.f32 %v417, %v604
        %v609 = vmul.f32 %v467, %v605
        %v610 = vmul.f32 %v517, %v606
        %v611 = vmul.f32 %v567, %v607
        %v612 = vadd.f32 %v600, %v608
        %v613 = vadd.f32 %v601, %v609
        %v614 = vadd.f32 %v602, %v610
        %v615 = vadd.f32 %v603, %v611
        %v616 = vperm.slane %v432, 0
        %v617 = vperm.slane %v482, 0
        %v618 = vperm.slane %v532, 0
        %v619 = vperm.slane %v582, 0
        %v620 = vmul.f32 %v420, %v616
        %v621 = vmul.f32 %v470, %v617
        %v622 = vmul.f32 %v520, %v618
        %v623 = vmul.f32 %v570, %v619
        %v624 = vadd.f32 %v612, %v620
        %v625 = vadd.f32 %v613, %v621
        %v626 = vadd.f32 %v614, %v622
        %v627 = vadd.f32 %v615, %v623
        %v628 = vperm.slane %v432, 4
        %v629 = vperm.slane %v482, 4
        %v630 = vperm.slane %v532, 4
        %v631 = vperm.slane %v582, 4
        %v632 = vmul.f32 %v423, %v628
        %v633 = vmul.f32 %v473, %v629
        %v634 = vmul.f32 %v523, %v630
        %v635 = vmul.f32 %v573, %v631
        %v636 = vadd.f32 %v624, %v632
        %v637 = vadd.f32 %v625, %v633
        %v638 = vadd.f32 %v626, %v634
        %v639 = vadd.f32 %v627, %v635
        %v640 = vperm.slane %v435, 0
        %v641 = vperm.slane %v485, 0
        %v642 = vperm.slane %v535, 0
        %v643 = vperm.slane %v585, 0
        %v644 = vmul.f32 %v426, %v640
        %v645 = vmul.f32 %v476, %v641
        %v646 = vmul.f32 %v526, %v642
        %v647 = vmul.f32 %v576, %v643
        %v648 = vadd.f32 %v636, %v644
        %v649 = vadd.f32 %v637, %v645
        %v650 = vadd.f32 %v638, %v646
        %v651 = vadd.f32 %v639, %v647
        %v652 = vmul.f32 %v648, 0.4472136
        %v653 = vmul.f32 %v649, 0.4472136
        %v654 = vmul.f32 %v650, 0.4472136
        %v655 = vmul.f32 %v651, 0.4472136
        %v656 = vperm.slane %v429, 1
        %v657 = vperm.slane %v479, 1
        %v658 = vperm.slane %v529, 1
        %v659 = vperm.slane %v579, 1
        %v660 = vmul.f32 %v414, %v656
        %v661 = vmul.f32 %v464, %v657
        %v662 = vmul.f32 %v514, %v658
        %v663 = vmul.f32 %v564, %v659
        %v664 = vperm.slane %v429, 5
        %v665 = vperm.slane %v479, 5
        %v666 = vperm.slane %v529, 5
        %v667 = vperm.slane %v579, 5
        %v668 = vmul.f32 %v417, %v664
        %v669 = vmul.f32 %v467, %v665
        %v670 = vmul.f32 %v517, %v666
        %v671 = vmul.f32 %v567, %v667
        %v672 = vadd.f32 %v660, %v668
        %v673 = vadd.f32 %v661, %v669
        %v674 = vadd.f32 %v662, %v670
        %v675 = vadd.f32 %v663, %v671
        %v676 = vperm.slane %v432, 1
        %v677 = vperm.slane %v482, 1
        %v678 = vperm.slane %v532, 1
        %v679 = vperm.slane %v582, 1
        %v680 = vmul.f32 %v420, %v676
        %v681 = vmul.f32 %v470, %v677
        %v682 = vmul.f32 %v520, %v678
        %v683 = vmul.f32 %v570, %v679
        %v684 = vadd.f32 %v672, %v680
        %v685 = vadd.f32 %v673, %v681
        %v686 = vadd.f32 %v674, %v682
        %v687 = vadd.f32 %v675, %v683
        %v688 = vperm.slane %v432, 5
        %v689 = vperm.slane %v482, 5
        %v690 = vperm.slane %v532, 5
        %v691 = vperm.slane %v582, 5
        %v692 = vmul.f32 %v423, %v688
        %v693 = vmul.f32 %v473, %v689
        %v694 = vmul.f32 %v523, %v690
        %v695 = vmul.f32 %v573, %v691
        %v696 = vadd.f32 %v684, %v692
        %v697 = vadd.f32 %v685, %v693
        %v698 = vadd.f32 %v686, %v694
        %v699 = vadd.f32 %v687, %v695
        %v700 = vperm.slane %v435, 1
        %v701 = vperm.slane %v485, 1
        %v702 = vperm.slane %v535, 1
        %v703 = vperm.slane %v585, 1
        %v704 = vmul.f32 %v426, %v700
        %v705 = vmul.f32 %v476, %v701
        %v706 = vmul.f32 %v526, %v702
        %v707 = vmul.f32 %v576, %v703
        %v708 = vadd.f32 %v696, %v704
        %v709 = vadd.f32 %v697, %v705
        %v710 = vadd.f32 %v698, %v706
        %v711 = vadd.f32 %v699, %v707
        %v712 = vmul.f32 %v708, 0.4472136
        %v713 = vmul.f32 %v709, 0.4472136
        %v714 = vmul.f32 %v710, 0.4472136
        %v715 = vmul.f32 %v711, 0.4472136
        %v716 = vperm.slane %v429, 2
        %v717 = vperm.slane %v479, 2
        %v718 = vperm.slane %v529, 2
        %v719 = vperm.slane %v579, 2
        %v720 = vmul.f32 %v414, %v716
        %v721 = vmul.f32 %v464, %v717
        %v722 = vmul.f32 %v514, %v718
        %v723 = vmul.f32 %v564, %v719
        %v724 = vperm.slane %v429, 6
        %v725 = vperm.slane %v479, 6
        %v726 = vperm.slane %v529, 6
        %v727 = vperm.slane %v579, 6
        %v728 = vmul.f32 %v417, %v724
        %v729 = vmul.f32 %v467, %v725
        %v730 = vmul.f32 %v517, %v726
        %v731 = vmul.f32 %v567, %v727
        %v732 = vadd.f32 %v720, %v728
        %v733 = vadd.f32 %v721, %v729
        %v734 = vadd.f32 %v722, %v730
        %v735 = vadd.f32 %v723, %v731
        %v736 = vperm.slane %v432, 2
        %v737 = vperm.slane %v482, 2
        %v738 = vperm.slane %v532, 2
        %v739 = vperm.slane %v582, 2
        %v740 = vmul.f32 %v420, %v736
        %v741 = vmul.f32 %v470, %v737
        %v742 = vmul.f32 %v520, %v738
        %v743 = vmul.f32 %v570, %v739
        %v744 = vadd.f32 %v732, %v740
        %v745 = vadd.f32 %v733, %v741
        %v746 = vadd.f32 %v734, %v742
        %v747 = vadd.f32 %v735, %v743
        %v748 = vperm.slane %v432, 6
        %v749 = vperm.slane %v482, 6
        %v750 = vperm.slane %v532, 6
        %v751 = vperm.slane %v582, 6
        %v752 = vmul.f32 %v423, %v748
        %v753 = vmul.f32 %v473, %v749
        %v754 = vmul.f32 %v523, %v750
        %v755 = vmul.f32 %v573, %v751
        %v756 = vadd.f32 %v744, %v752
        %v757 = vadd.f32 %v745, %v753
        %v758 = vadd.f32 %v746, %v754
        %v759 = vadd.f32 %v747, %v755
        %v760 = vperm.slane %v435, 2
        %v761 = vperm.slane %v485, 2
        %v762 = vperm.slane %v535, 2
        %v763 = vperm.slane %v585, 2
        %v764 = vmul.f32 %v426, %v760
        %v765 = vmul.f32 %v476, %v761
        %v766 = vmul.f32 %v526, %v762
        %v767 = vmul.f32 %v576, %v763
        %v768 = vadd.f32 %v756, %v764
        %v769 = vadd.f32 %v757, %v765
        %v770 = vadd.f32 %v758, %v766
        %v771 = vadd.f32 %v759, %v767
        %v772 = vmul.f32 %v768, 0.4472136
        %v773 = vmul.f32 %v769, 0.4472136
        %v774 = vmul.f32 %v770, 0.4472136
        %v775 = vmul.f32 %v771, 0.4472136
        %v776 = vperm.slane %v429, 3
        %v777 = vperm.slane %v479, 3
        %v778 = vperm.slane %v529, 3
        %v779 = vperm.slane %v579, 3
        %v780 = vmul.f32 %v414, %v776
        %v781 = vmul.f32 %v464, %v777
        %v782 = vmul.f32 %v514, %v778
        %v783 = vmul.f32 %v564, %v779
        %v784 = vperm.slane %v429, 7
        %v785 = vperm.slane %v479, 7
        %v786 = vperm.slane %v529, 7
        %v787 = vperm.slane %v579, 7
        %v788 = vmul.f32 %v417, %v784
        %v789 = vmul.f32 %v467, %v785
        %v790 = vmul.f32 %v517, %v786
        %v791 = vmul.f32 %v567, %v787
        %v792 = vadd.f32 %v780, %v788
        %v793 = vadd.f32 %v781, %v789
        %v794 = vadd.f32 %v782, %v790
        %v795 = vadd.f32 %v783, %v791
        %v796 = vperm.slane %v432, 3
        %v797 = vperm.slane %v482, 3
        %v798 = vperm.slane %v532, 3
        %v799 = vperm.slane %v582, 3
        %v800 = vmul.f32 %v420, %v796
        %v801 = vmul.f32 %v470, %v797
        %v802 = vmul.f32 %v520, %v798
        %v803 = vmul.f32 %v570, %v799
        %v804 = vadd.f32 %v792, %v800
        %v805 = vadd.f32 %v793, %v801
        %v806 = vadd.f32 %v794, %v802
        %v807 = vadd.f32 %v795, %v803
        %v808 = vperm.slane %v432, 7
        %v809 = vperm.slane %v482, 7
        %v810 = vperm.slane %v532, 7
        %v811 = vperm.slane %v582, 7
        %v812 = vmul.f32 %v423, %v808
        %v813 = vmul.f32 %v473, %v809
        %v814 = vmul.f32 %v523, %v810
        %v815 = vmul.f32 %v573, %v811
        %v816 = vadd.f32 %v804, %v812
        %v817 = vadd.f32 %v805, %v813
        %v818 = vadd.f32 %v806, %v814
        %v819 = vadd.f32 %v807, %v815
        %v820 = vperm.slane %v435, 3
        %v821 = vperm.slane %v485, 3
        %v822 = vperm.slane %v535, 3
        %v823 = vperm.slane %v585, 3
        %v824 = vmul.f32 %v426, %v820
        %v825 = vmul.f32 %v476, %v821
        %v826 = vmul.f32 %v526, %v822
        %v827 = vmul.f32 %v576, %v823
        %v828 = vadd.f32 %v816, %v824
        %v829 = vadd.f32 %v817, %v825
        %v830 = vadd.f32 %v818, %v826
        %v831 = vadd.f32 %v819, %v827
        %v832 = vmul.f32 %v828, 0.4472136
        %v833 = vmul.f32 %v829, 0.4472136
        %v834 = vmul.f32 %v830, 0.4472136
        %v835 = vmul.f32 %v831, 0.4472136
        %v836 = vmax.f32 %v652, %v712
        %v837 = vmax.f32 %v653, %v713
        %v838 = vmax.f32 %v654, %v714
        %v839 = vmax.f32 %v655, %v715
        %v840 = vmax.f32 %v836, %v772
        %v841 = vmax.f32 %v837, %v773
        %v842 = vmax.f32 %v838, %v774
        %v843 = vmax.f32 %v839, %v775
        %v844 = vmax.f32 %v840, %v832
        %v845 = vmax.f32 %v841, %v833
        %v846 = vmax.f32 %v842, %v834
        %v847 = vmax.f32 %v843, %v835
        %v848 = vsub.f32 %v652, %v844
        %v849 = vsub.f32 %v653, %v845
        %v850 = vsub.f32 %v654, %v846
        %v851 = vsub.f32 %v655, %v847
        %v852 = vmul.f32 %v848, 1.442695
        %v853 = vpow.pop %v852
        %v854 = vmul.f32 %v849, 1.442695
        %v855 = vpow.pop %v854
        %v856 = vmul.f32 %v850, 1.442695
        %v857 = vpow.pop %v856
        %v858 = vmul.f32 %v851, 1.442695
        %v859 = vpow.pop %v858
        %v860 = vsub.f32 %v712, %v844
        %v861 = vsub.f32 %v713, %v845
        %v862 = vsub.f32 %v714, %v846
        %v863 = vsub.f32 %v715, %v847
        %v864 = vmul.f32 %v860, 1.442695
        %v865 = vpow.pop %v864
        %v866 = vmul.f32 %v861, 1.442695
        %v867 = vpow.pop %v866
        %v868 = vmul.f32 %v862, 1.442695
        %v869 = vpow.pop %v868
        %v870 = vmul.f32 %v863, 1.442695
        %v871 = vpow.pop %v870
        %v872 = vsub.f32 %v772, %v844
        %v873 = vsub.f32 %v773, %v845
        %v874 = vsub.f32 %v774, %v846
        %v875 = vsub.f32 %v775, %v847
        %v876 = vmul.f32 %v872, 1.442695
        %v877 = vpow.pop %v876
        %v878 = vmul.f32 %v873, 1.442695
        %v879 = vpow.pop %v878
        %v880 = vmul.f32 %v874, 1.442695
        %v881 = vpow.pop %v880
        %v882 = vmul.f32 %v875, 1.442695
        %v883 = vpow.pop %v882
        %v884 = vsub.f32 %v832, %v844
        %v885 = vsub.f32 %v833, %v845
        %v886 = vsub.f32 %v834, %v846
        %v887 = vsub.f32 %v835, %v847
        %v888 = vmul.f32 %v884, 1.442695
        %v889 = vpow.pop %v888
        %v890 = vmul.f32 %v885, 1.442695
        %v891 = vpow.pop %v890
        %v892 = vmul.f32 %v886, 1.442695
        %v893 = vpow.pop %v892
        %v894 = vmul.f32 %v887, 1.442695
        %v895 = vpow.pop %v894
        %v896 = vadd.f32 %v853, %v865
        %v897 = vadd.f32 %v855, %v867
        %v898 = vadd.f32 %v857, %v869
        %v899 = vadd.f32 %v859, %v871
        %v900 = vadd.f32 %v896, %v877
        %v901 = vadd.f32 %v897, %v879
        %v902 = vadd.f32 %v898, %v881
        %v903 = vadd.f32 %v899, %v883
        %v904 = vadd.f32 %v900, %v889
        %v905 = vadd.f32 %v901, %v891
        %v906 = vadd.f32 %v902, %v893
        %v907 = vadd.f32 %v903, %v895
        %v908 = vrcp.pop %v904
        %v909 = vrcp.pop %v905
        %v910 = vrcp.pop %v906
        %v911 = vrcp.pop %v907
        %v912 = vmul.f32 %v853, %v908
        %v913 = vmul.f32 %v855, %v909
        %v914 = vmul.f32 %v857, %v910
        %v915 = vmul.f32 %v859, %v911
        %v916 = vmul.f32 %v865, %v908
        %v917 = vmul.f32 %v867, %v909
        %v918 = vmul.f32 %v869, %v910
        %v919 = vmul.f32 %v871, %v911
        %v920 = vmul.f32 %v877, %v908
        %v921 = vmul.f32 %v879, %v909
        %v922 = vmul.f32 %v881, %v910
        %v923 = vmul.f32 %v883, %v911
        %v924 = vmul.f32 %v889, %v908
        %v925 = vmul.f32 %v891, %v909
        %v926 = vmul.f32 %v893, %v910
        %v927 = vmul.f32 %v895, %v911
        %v928 = vperm.slane %v438, 0
        %v929 = vperm.slane %v488, 0
        %v930 = vperm.slane %v538, 0
        %v931 = vperm.slane %v588, 0
        %v932 = vmul.f32 %v912, %v928
        %v933 = vmul.f32 %v913, %v929
        %v934 = vmul.f32 %v914, %v930
        %v935 = vmul.f32 %v915, %v931
        %v936 = vperm.slane %v438, 1
        %v937 = vperm.slane %v488, 1
        %v938 = vperm.slane %v538, 1
        %v939 = vperm.slane %v588, 1
        %v940 = vmul.f32 %v916, %v936
        %v941 = vmul.f32 %v917, %v937
        %v942 = vmul.f32 %v918, %v938
        %v943 = vmul.f32 %v919, %v939
        %v944 = vadd.f32 %v932, %v940
        %v945 = vadd.f32 %v933, %v941
        %v946 = vadd.f32 %v934, %v942
        %v947 = vadd.f32 %v935, %v943
        %v948 = vperm.slane %v438, 2
        %v949 = vperm.slane %v488, 2
        %v950 = vperm.slane %v538, 2
        %v951 = vperm.slane %v588, 2
        %v952 = vmul.f32 %v920, %v948
        %v953 = vmul.f32 %v921, %v949
        %v954 = vmul.f32 %v922, %v950
        %v955 = vmul.f32 %v923, %v951
        %v956 = vadd.f32 %v944, %v952
        %v957 = vadd.f32 %v945, %v953
        %v958 = vadd.f32 %v946, %v954
        %v959 = vadd.f32 %v947, %v955
        %v960 = vperm.slane %v438, 3
        %v961 = vperm.slane %v488, 3
        %v962 = vperm.slane %v538, 3
        %v963 = vperm.slane %v588, 3
        %v964 = vmul.f32 %v924, %v960
        %v965 = vmul.f32 %v925, %v961
        %v966 = vmul.f32 %v926, %v962
        %v967 = vmul.f32 %v927, %v963
        %v968 = vadd.f32 %v956, %v964
        %v969 = vadd.f32 %v957, %v965
        %v970 = vadd.f32 %v958, %v966
        %v971 = vadd.f32 %v959, %v967
        %v972 = vperm.slane %v438, 4
        %v973 = vperm.slane %v488, 4
        %v974 = vperm.slane %v538, 4
        %v975 = vperm.slane %v588, 4
        %v976 = vmul.f32 %v912, %v972
        %v977 = vmul.f32 %v913, %v973
        %v978 = vmul.f32 %v914, %v974
        %v979 = vmul.f32 %v915, %v975
        %v980 = vperm.slane %v438, 5
        %v981 = vperm.slane %v488, 5
        %v982 = vperm.slane %v538, 5
        %v983 = vperm.slane %v588, 5
        %v984 = vmul.f32 %v916, %v980
        %v985 = vmul.f32 %v917, %v981
        %v986 = vmul.f32 %v918, %v982
        %v987 = vmul.f32 %v919, %v983
        %v988 = vadd.f32 %v976, %v984
        %v989 = vadd.f32 %v977, %v985
        %v990 = vadd.f32 %v978, %v986
        %v991 = vadd.f32 %v979, %v987
        %v992 = vperm.slane %v438, 6
        %v993 = vperm.slane %v488, 6
        %v994 = vperm.slane %v538, 6
        %v995 = vperm.slane %v588, 6
        %v996 = vmul.f32 %v920, %v992
        %v997 = vmul.f32 %v921, %v993
        %v998 = vmul.f32 %v922, %v994
        %v999 = vmul.f32 %v923, %v995
        %v1000 = vadd.f32 %v988, %v996
        %v1001 = vadd.f32 %v989, %v997
        %v1002 = vadd.f32 %v990, %v998
        %v1003 = vadd.f32 %v991, %v999
        %v1004 = vperm.slane %v438, 7
        %v1005 = vperm.slane %v488, 7
        %v1006 = vperm.slane %v538, 7
        %v1007 = vperm.slane %v588, 7
        %v1008 = vmul.f32 %v924, %v1004
        %v1009 = vmul.f32 %v925, %v1005
        %v1010 = vmul.f32 %v926, %v1006
        %v1011 = vmul.f32 %v927, %v1007
        %v1012 = vadd.f32 %v1000, %v1008
        %v1013 = vadd.f32 %v1001, %v1009
        %v1014 = vadd.f32 %v1002, %v1010
        %v1015 = vadd.f32 %v1003, %v1011
        %v1016 = vperm.slane %v441, 0
        %v1017 = vperm.slane %v491, 0
        %v1018 = vperm.slane %v541, 0
        %v1019 = vperm.slane %v591, 0
        %v1020 = vmul.f32 %v912, %v1016
        %v1021 = vmul.f32 %v913, %v1017
        %v1022 = vmul.f32 %v914, %v1018
        %v1023 = vmul.f32 %v915, %v1019
        %v1024 = vperm.slane %v441, 1
        %v1025 = vperm.slane %v491, 1
        %v1026 = vperm.slane %v541, 1
        %v1027 = vperm.slane %v591, 1
        %v1028 = vmul.f32 %v916, %v1024
        %v1029 = vmul.f32 %v917, %v1025
        %v1030 = vmul.f32 %v918, %v1026
        %v1031 = vmul.f32 %v919, %v1027
        %v1032 = vadd.f32 %v1020, %v1028
        %v1033 = vadd.f32 %v1021, %v1029
        %v1034 = vadd.f32 %v1022, %v1030
        %v1035 = vadd.f32 %v1023, %v1031
        %v1036 = vperm.slane %v441, 2
        %v1037 = vperm.slane %v491, 2
        %v1038 = vperm.slane %v541, 2
        %v1039 = vperm.slane %v591, 2
        %v1040 = vmul.f32 %v920, %v1036
        %v1041 = vmul.f32 %v921, %v1037
        %v1042 = vmul.f32 %v922, %v1038
        %v1043 = vmul.f32 %v923, %v1039
        %v1044 = vadd.f32 %v1032, %v1040
        %v1045 = vadd.f32 %v1033, %v1041
        %v1046 = vadd.f32 %v1034, %v1042
        %v1047 = vadd.f32 %v1035, %v1043
        %v1048 = vperm.slane %v441, 3
        %v1049 = vperm.slane %v491, 3
        %v1050 = vperm.slane %v541, 3
        %v1051 = vperm.slane %v591, 3
        %v1052 = vmul.f32 %v924, %v1048
        %v1053 = vmul.f32 %v925, %v1049
        %v1054 = vmul.f32 %v926, %v1050
        %v1055 = vmul.f32 %v927, %v1051
        %v1056 = vadd.f32 %v1044, %v1052
        %v1057 = vadd.f32 %v1045, %v1053
        %v1058 = vadd.f32 %v1046, %v1054
        %v1059 = vadd.f32 %v1047, %v1055
        %v1060 = vperm.slane %v441, 4
        %v1061 = vperm.slane %v491, 4
        %v1062 = vperm.slane %v541, 4
        %v1063 = vperm.slane %v591, 4
        %v1064 = vmul.f32 %v912, %v1060
        %v1065 = vmul.f32 %v913, %v1061
        %v1066 = vmul.f32 %v914, %v1062
        %v1067 = vmul.f32 %v915, %v1063
        %v1068 = vperm.slane %v441, 5
        %v1069 = vperm.slane %v491, 5
        %v1070 = vperm.slane %v541, 5
        %v1071 = vperm.slane %v591, 5
        %v1072 = vmul.f32 %v916, %v1068
        %v1073 = vmul.f32 %v917, %v1069
        %v1074 = vmul.f32 %v918, %v1070
        %v1075 = vmul.f32 %v919, %v1071
        %v1076 = vadd.f32 %v1064, %v1072
        %v1077 = vadd.f32 %v1065, %v1073
        %v1078 = vadd.f32 %v1066, %v1074
        %v1079 = vadd.f32 %v1067, %v1075
        %v1080 = vperm.slane %v441, 6
        %v1081 = vperm.slane %v491, 6
        %v1082 = vperm.slane %v541, 6
        %v1083 = vperm.slane %v591, 6
        %v1084 = vmul.f32 %v920, %v1080
        %v1085 = vmul.f32 %v921, %v1081
        %v1086 = vmul.f32 %v922, %v1082
        %v1087 = vmul.f32 %v923, %v1083
        %v1088 = vadd.f32 %v1076, %v1084
        %v1089 = vadd.f32 %v1077, %v1085
        %v1090 = vadd.f32 %v1078, %v1086
        %v1091 = vadd.f32 %v1079, %v1087
        %v1092 = vperm.slane %v441, 7
        %v1093 = vperm.slane %v491, 7
        %v1094 = vperm.slane %v541, 7
        %v1095 = vperm.slane %v591, 7
        %v1096 = vmul.f32 %v924, %v1092
        %v1097 = vmul.f32 %v925, %v1093
        %v1098 = vmul.f32 %v926, %v1094
        %v1099 = vmul.f32 %v927, %v1095
        %v1100 = vadd.f32 %v1088, %v1096
        %v1101 = vadd.f32 %v1089, %v1097
        %v1102 = vadd.f32 %v1090, %v1098
        %v1103 = vadd.f32 %v1091, %v1099
        %v1104 = vperm.slane %v444, 0
        %v1105 = vperm.slane %v494, 0
        %v1106 = vperm.slane %v544, 0
        %v1107 = vperm.slane %v594, 0
        %v1108 = vmul.f32 %v912, %v1104
        %v1109 = vmul.f32 %v913, %v1105
        %v1110 = vmul.f32 %v914, %v1106
        %v1111 = vmul.f32 %v915, %v1107
        %v1112 = vperm.slane %v444, 1
        %v1113 = vperm.slane %v494, 1
        %v1114 = vperm.slane %v544, 1
        %v1115 = vperm.slane %v594, 1
        %v1116 = vmul.f32 %v916, %v1112
        %v1117 = vmul.f32 %v917, %v1113
        %v1118 = vmul.f32 %v918, %v1114
        %v1119 = vmul.f32 %v919, %v1115
        %v1120 = vadd.f32 %v1108, %v1116
        %v1121 = vadd.f32 %v1109, %v1117
        %v1122 = vadd.f32 %v1110, %v1118
        %v1123 = vadd.f32 %v1111, %v1119
        %v1124 = vperm.slane %v444, 2
        %v1125 = vperm.slane %v494, 2
        %v1126 = vperm.slane %v544, 2
        %v1127 = vperm.slane %v594, 2
        %v1128 = vmul.f32 %v920, %v1124
        %v1129 = vmul.f32 %v921, %v1125
        %v1130 = vmul.f32 %v922, %v1126
        %v1131 = vmul.f32 %v923, %v1127
        %v1132 = vadd.f32 %v1120, %v1128
        %v1133 = vadd.f32 %v1121, %v1129
        %v1134 = vadd.f32 %v1122, %v1130
        %v1135 = vadd.f32 %v1123, %v1131
        %v1136 = vperm.slane %v444, 3
        %v1137 = vperm.slane %v494, 3
        %v1138 = vperm.slane %v544, 3
        %v1139 = vperm.slane %v594, 3
        %v1140 = vmul.f32 %v924, %v1136
        %v1141 = vmul.f32 %v925, %v1137
        %v1142 = vmul.f32 %v926, %v1138
        %v1143 = vmul.f32 %v927, %v1139
        %v1144 = vadd.f32 %v1132, %v1140
        %v1145 = vadd.f32 %v1133, %v1141
        %v1146 = vadd.f32 %v1134, %v1142
        %v1147 = vadd.f32 %v1135, %v1143
        %v1149 = vsel %vm362, %v260, 0
        %v1152 = vsel %vm362, %v261, 0
        %v1155 = vsel %vm362, %v262, 0
        %v1158 = vsel %vm362, %v263, 0
        %v1161 = vsel %vm362, %v264, 0
        %1163 = vmatpush.msra.mxu0 0.0
        %1164 = vmatpush.msra.mxu0 0.0
        %1165 = vmatpush.msra.mxu0 0.0
        %1166 = vmatpush.msra.mxu0 0.0
        %1167 = vmatpush.msra.mxu0 0.0
        %1168 = vmatpush.msra.mxu0 0.0
        %1169 = vmatpush.msra.mxu0 0.0
        %1170 = vmatpush.msra.mxu0 0.0
        %1171 = vmatpush.msra.mxu0 0.0
        %1172 = vmatpush.msra.mxu0 0.0
        %1173 = vmatpush.msra.mxu0 0.0
        %1174 = vmatpush.msra.mxu0 %v1144
        %1175 = vmatpush.msra.mxu0 %v1100
        %1176 = vmatpush.msra.mxu0 %v1056
        %1177 = vmatpush.msra.mxu0 %v1012
        %1178 = vmatpush.msra.mxu0 %v968
        %1179 = vmatmul.f32.gmra.mxu0 %v1149
        %v1180 = vpop.f32.mrf.mxu0
        %v1181 = vadd.f32 0.0, %v1180
        %1182 = vmatmul.f32.gmra.mxu0 %v1152
        %v1183 = vpop.f32.mrf.mxu0
        %v1184 = vadd.f32 0.0, %v1183
        %1185 = vmatmul.f32.gmra.mxu0 %v1155
        %v1186 = vpop.f32.mrf.mxu0
        %v1187 = vadd.f32 0.0, %v1186
        %1188 = vmatmul.f32.gmra.mxu0 %v1158
        %v1189 = vpop.f32.mrf.mxu0
        %v1190 = vadd.f32 0.0, %v1189
        %1191 = vmatmul.f32.gmra.mxu0 %v1161
        %v1192 = vpop.f32.mrf.mxu0
        %v1193 = vadd.f32 0.0, %v1192
        %1194 = vdwg.mxu0
        %1195 = vmatpush.msra.mxu0 0.0
        %1196 = vmatpush.msra.mxu0 0.0
        %1197 = vmatpush.msra.mxu0 0.0
        %1198 = vmatpush.msra.mxu0 0.0
        %1199 = vmatpush.msra.mxu0 0.0
        %1200 = vmatpush.msra.mxu0 0.0
        %1201 = vmatpush.msra.mxu0 0.0
        %1202 = vmatpush.msra.mxu0 0.0
        %1203 = vmatpush.msra.mxu0 0.0
        %1204 = vmatpush.msra.mxu0 0.0
        %1205 = vmatpush.msra.mxu0 0.0
        %1206 = vmatpush.msra.mxu0 %v1145
        %1207 = vmatpush.msra.mxu0 %v1101
        %1208 = vmatpush.msra.mxu0 %v1057
        %1209 = vmatpush.msra.mxu0 %v1013
        %1210 = vmatpush.msra.mxu0 %v969
        %1211 = vmatmul.f32.gmra.mxu0 %v1149
        %v1212 = vpop.f32.mrf.mxu0
        %v1213 = vadd.f32 0.0, %v1212
        %1214 = vmatmul.f32.gmra.mxu0 %v1152
        %v1215 = vpop.f32.mrf.mxu0
        %v1216 = vadd.f32 0.0, %v1215
        %1217 = vmatmul.f32.gmra.mxu0 %v1155
        %v1218 = vpop.f32.mrf.mxu0
        %v1219 = vadd.f32 0.0, %v1218
        %1220 = vmatmul.f32.gmra.mxu0 %v1158
        %v1221 = vpop.f32.mrf.mxu0
        %v1222 = vadd.f32 0.0, %v1221
        %1223 = vmatmul.f32.gmra.mxu0 %v1161
        %v1224 = vpop.f32.mrf.mxu0
        %v1225 = vadd.f32 0.0, %v1224
        %1226 = vdwg.mxu0
        %1227 = vmatpush.msra.mxu0 0.0
        %1228 = vmatpush.msra.mxu0 0.0
        %1229 = vmatpush.msra.mxu0 0.0
        %1230 = vmatpush.msra.mxu0 0.0
        %1231 = vmatpush.msra.mxu0 0.0
        %1232 = vmatpush.msra.mxu0 0.0
        %1233 = vmatpush.msra.mxu0 0.0
        %1234 = vmatpush.msra.mxu0 0.0
        %1235 = vmatpush.msra.mxu0 0.0
        %1236 = vmatpush.msra.mxu0 0.0
        %1237 = vmatpush.msra.mxu0 0.0
        %1238 = vmatpush.msra.mxu0 %v1146
        %1239 = vmatpush.msra.mxu0 %v1102
        %1240 = vmatpush.msra.mxu0 %v1058
        %1241 = vmatpush.msra.mxu0 %v1014
        %1242 = vmatpush.msra.mxu0 %v970
        %1243 = vmatmul.f32.gmra.mxu0 %v1149
        %v1244 = vpop.f32.mrf.mxu0
        %v1245 = vadd.f32 0.0, %v1244
        %1246 = vmatmul.f32.gmra.mxu0 %v1152
        %v1247 = vpop.f32.mrf.mxu0
        %v1248 = vadd.f32 0.0, %v1247
        %1249 = vmatmul.f32.gmra.mxu0 %v1155
        %v1250 = vpop.f32.mrf.mxu0
        %v1251 = vadd.f32 0.0, %v1250
        %1252 = vmatmul.f32.gmra.mxu0 %v1158
        %v1253 = vpop.f32.mrf.mxu0
        %v1254 = vadd.f32 0.0, %v1253
        %1255 = vmatmul.f32.gmra.mxu0 %v1161
        %v1256 = vpop.f32.mrf.mxu0
        %v1257 = vadd.f32 0.0, %v1256
        %1258 = vdwg.mxu0
        %1259 = vmatpush.msra.mxu0 0.0
        %1260 = vmatpush.msra.mxu0 0.0
        %1261 = vmatpush.msra.mxu0 0.0
        %1262 = vmatpush.msra.mxu0 0.0
        %1263 = vmatpush.msra.mxu0 0.0
        %1264 = vmatpush.msra.mxu0 0.0
        %1265 = vmatpush.msra.mxu0 0.0
        %1266 = vmatpush.msra.mxu0 0.0
        %1267 = vmatpush.msra.mxu0 0.0
        %1268 = vmatpush.msra.mxu0 0.0
        %1269 = vmatpush.msra.mxu0 0.0
        %1270 = vmatpush.msra.mxu0 %v1147
        %1271 = vmatpush.msra.mxu0 %v1103
        %1272 = vmatpush.msra.mxu0 %v1059
        %1273 = vmatpush.msra.mxu0 %v1015
        %1274 = vmatpush.msra.mxu0 %v971
        %1275 = vmatmul.f32.gmra.mxu0 %v1149
        %v1276 = vpop.f32.mrf.mxu0
        %v1277 = vadd.f32 0.0, %v1276
        %1278 = vmatmul.f32.gmra.mxu0 %v1152
        %v1279 = vpop.f32.mrf.mxu0
        %v1280 = vadd.f32 0.0, %v1279
        %1281 = vmatmul.f32.gmra.mxu0 %v1155
        %v1282 = vpop.f32.mrf.mxu0
        %v1283 = vadd.f32 0.0, %v1282
        %1284 = vmatmul.f32.gmra.mxu0 %v1158
        %v1285 = vpop.f32.mrf.mxu0
        %v1286 = vadd.f32 0.0, %v1285
        %1287 = vmatmul.f32.gmra.mxu0 %v1161
        %v1288 = vpop.f32.mrf.mxu0
        %v1289 = vadd.f32 0.0, %v1288
        %1290 = vdwg.mxu0
        %v1291 = vadd.f32 %v229, %v1181
        %v1292 = vadd.f32 %v230, %v1213
        %v1293 = vadd.f32 %v231, %v1245
        %v1294 = vadd.f32 %v232, %v1277
        %v1295 = vadd.f32 %v233, %v1184
        %v1296 = vadd.f32 %v234, %v1216
        %v1297 = vadd.f32 %v235, %v1248
        %v1298 = vadd.f32 %v236, %v1280
        %v1299 = vadd.f32 %v237, %v1187
        %v1300 = vadd.f32 %v238, %v1219
        %v1301 = vadd.f32 %v239, %v1251
        %v1302 = vadd.f32 %v240, %v1283
        %v1303 = vadd.f32 %v241, %v1190
        %v1304 = vadd.f32 %v242, %v1222
        %v1305 = vadd.f32 %v243, %v1254
        %v1306 = vadd.f32 %v244, %v1286
        %v1307 = vadd.f32 %v245, %v1193
        %v1308 = vadd.f32 %v246, %v1225
        %v1309 = vadd.f32 %v247, %v1257
        %v1310 = vadd.f32 %v248, %v1289
        %1312 = vset.pattern.permute.xlu0 0
        %1313 = vperm.xlu0 %1312, %v289
        %v1314 = vpop.permute.xlu0 %1313
        %1317 = vset.pattern.permute.xlu0 0
        %1318 = vperm.xlu0 %1317, %v290
        %v1319 = vpop.permute.xlu0 %1318
        %1322 = vset.pattern.permute.xlu0 0
        %1323 = vperm.xlu0 %1322, %v291
        %v1324 = vpop.permute.xlu0 %1323
        %1327 = vset.pattern.permute.xlu0 0
        %1328 = vperm.xlu0 %1327, %v292
        %v1329 = vpop.permute.xlu0 %1328
        %1332 = vset.pattern.permute.xlu0 0
        %1333 = vperm.xlu0 %1332, %v293
        %v1334 = vpop.permute.xlu0 %1333
        %v1336 = vadd.f32 %v1291, %v1314
        %v1337 = vadd.f32 %v1292, %v1314
        %v1338 = vadd.f32 %v1293, %v1314
        %v1339 = vadd.f32 %v1294, %v1314
        %v1340 = vadd.f32 %v1295, %v1319
        %v1341 = vadd.f32 %v1296, %v1319
        %v1342 = vadd.f32 %v1297, %v1319
        %v1343 = vadd.f32 %v1298, %v1319
        %v1344 = vadd.f32 %v1299, %v1324
        %v1345 = vadd.f32 %v1300, %v1324
        %v1346 = vadd.f32 %v1301, %v1324
        %v1347 = vadd.f32 %v1302, %v1324
        %v1348 = vadd.f32 %v1303, %v1329
        %v1349 = vadd.f32 %v1304, %v1329
        %v1350 = vadd.f32 %v1305, %v1329
        %v1351 = vadd.f32 %v1306, %v1329
        %v1352 = vadd.f32 %v1307, %v1334
        %v1353 = vadd.f32 %v1308, %v1334
        %v1354 = vadd.f32 %v1309, %v1334
        %v1355 = vadd.f32 %v1310, %v1334
        %v1357 = vsel %vm362, %v265, 0
        %v1360 = vsel %vm362, %v266, 0
        %v1363 = vsel %vm362, %v267, 0
        %v1366 = vsel %vm362, %v268, 0
        %v1369 = vsel %vm362, %v269, 0
        %1371 = vmatpush.msra.mxu0 0.0
        %1372 = vmatpush.msra.mxu0 0.0
        %1373 = vmatpush.msra.mxu0 0.0
        %1374 = vmatpush.msra.mxu0 0.0
        %1375 = vmatpush.msra.mxu0 0.0
        %1376 = vmatpush.msra.mxu0 0.0
        %1377 = vmatpush.msra.mxu0 0.0
        %1378 = vmatpush.msra.mxu0 0.0
        %1379 = vmatpush.msra.mxu0 0.0
        %1380 = vmatpush.msra.mxu0 0.0
        %1381 = vmatpush.msra.mxu0 0.0
        %1382 = vmatpush.msra.mxu0 %v1352
        %1383 = vmatpush.msra.mxu0 %v1348
        %1384 = vmatpush.msra.mxu0 %v1344
        %1385 = vmatpush.msra.mxu0 %v1340
        %1386 = vmatpush.msra.mxu0 %v1336
        %1387 = vmatmul.f32.gmra.mxu0 %v1357
        %v1388 = vpop.f32.mrf.mxu0
        %v1389 = vadd.f32 0.0, %v1388
        %1390 = vmatmul.f32.gmra.mxu0 %v1360
        %v1391 = vpop.f32.mrf.mxu0
        %v1392 = vadd.f32 0.0, %v1391
        %1393 = vmatmul.f32.gmra.mxu0 %v1363
        %v1394 = vpop.f32.mrf.mxu0
        %v1395 = vadd.f32 0.0, %v1394
        %1396 = vmatmul.f32.gmra.mxu0 %v1366
        %v1397 = vpop.f32.mrf.mxu0
        %v1398 = vadd.f32 0.0, %v1397
        %1399 = vmatmul.f32.gmra.mxu0 %v1369
        %v1400 = vpop.f32.mrf.mxu0
        %v1401 = vadd.f32 0.0, %v1400
        %1402 = vdwg.mxu0
        %1403 = vmatpush.msra.mxu0 0.0
        %1404 = vmatpush.msra.mxu0 0.0
        %1405 = vmatpush.msra.mxu0 0.0
        %1406 = vmatpush.msra.mxu0 0.0
        %1407 = vmatpush.msra.mxu0 0.0
        %1408 = vmatpush.msra.mxu0 0.0
        %1409 = vmatpush.msra.mxu0 0.0
        %1410 = vmatpush.msra.mxu0 0.0
        %1411 = vmatpush.msra.mxu0 0.0
        %1412 = vmatpush.msra.mxu0 0.0
        %1413 = vmatpush.msra.mxu0 0.0
        %1414 = vmatpush.msra.mxu0 %v1353
        %1415 = vmatpush.msra.mxu0 %v1349
        %1416 = vmatpush.msra.mxu0 %v1345
        %1417 = vmatpush.msra.mxu0 %v1341
        %1418 = vmatpush.msra.mxu0 %v1337
        %1419 = vmatmul.f32.gmra.mxu0 %v1357
        %v1420 = vpop.f32.mrf.mxu0
        %v1421 = vadd.f32 0.0, %v1420
        %1422 = vmatmul.f32.gmra.mxu0 %v1360
        %v1423 = vpop.f32.mrf.mxu0
        %v1424 = vadd.f32 0.0, %v1423
        %1425 = vmatmul.f32.gmra.mxu0 %v1363
        %v1426 = vpop.f32.mrf.mxu0
        %v1427 = vadd.f32 0.0, %v1426
        %1428 = vmatmul.f32.gmra.mxu0 %v1366
        %v1429 = vpop.f32.mrf.mxu0
        %v1430 = vadd.f32 0.0, %v1429
        %1431 = vmatmul.f32.gmra.mxu0 %v1369
        %v1432 = vpop.f32.mrf.mxu0
        %v1433 = vadd.f32 0.0, %v1432
        %1434 = vdwg.mxu0
        %1435 = vmatpush.msra.mxu0 0.0
        %1436 = vmatpush.msra.mxu0 0.0
        %1437 = vmatpush.msra.mxu0 0.0
        %1438 = vmatpush.msra.mxu0 0.0
        %1439 = vmatpush.msra.mxu0 0.0
        %1440 = vmatpush.msra.mxu0 0.0
        %1441 = vmatpush.msra.mxu0 0.0
        %1442 = vmatpush.msra.mxu0 0.0
        %1443 = vmatpush.msra.mxu0 0.0
        %1444 = vmatpush.msra.mxu0 0.0
        %1445 = vmatpush.msra.mxu0 0.0
        %1446 = vmatpush.msra.mxu0 %v1354
        %1447 = vmatpush.msra.mxu0 %v1350
        %1448 = vmatpush.msra.mxu0 %v1346
        %1449 = vmatpush.msra.mxu0 %v1342
        %1450 = vmatpush.msra.mxu0 %v1338
        %1451 = vmatmul.f32.gmra.mxu0 %v1357
        %v1452 = vpop.f32.mrf.mxu0
        %v1453 = vadd.f32 0.0, %v1452
        %1454 = vmatmul.f32.gmra.mxu0 %v1360
        %v1455 = vpop.f32.mrf.mxu0
        %v1456 = vadd.f32 0.0, %v1455
        %1457 = vmatmul.f32.gmra.mxu0 %v1363
        %v1458 = vpop.f32.mrf.mxu0
        %v1459 = vadd.f32 0.0, %v1458
        %1460 = vmatmul.f32.gmra.mxu0 %v1366
        %v1461 = vpop.f32.mrf.mxu0
        %v1462 = vadd.f32 0.0, %v1461
        %1463 = vmatmul.f32.gmra.mxu0 %v1369
        %v1464 = vpop.f32.mrf.mxu0
        %v1465 = vadd.f32 0.0, %v1464
        %1466 = vdwg.mxu0
        %1467 = vmatpush.msra.mxu0 0.0
        %1468 = vmatpush.msra.mxu0 0.0
        %1469 = vmatpush.msra.mxu0 0.0
        %1470 = vmatpush.msra.mxu0 0.0
        %1471 = vmatpush.msra.mxu0 0.0
        %1472 = vmatpush.msra.mxu0 0.0
        %1473 = vmatpush.msra.mxu0 0.0
        %1474 = vmatpush.msra.mxu0 0.0
        %1475 = vmatpush.msra.mxu0 0.0
        %1476 = vmatpush.msra.mxu0 0.0
        %1477 = vmatpush.msra.mxu0 0.0
        %1478 = vmatpush.msra.mxu0 %v1355
        %1479 = vmatpush.msra.mxu0 %v1351
        %1480 = vmatpush.msra.mxu0 %v1347
        %1481 = vmatpush.msra.mxu0 %v1343
        %1482 = vmatpush.msra.mxu0 %v1339
        %1483 = vmatmul.f32.gmra.mxu0 %v1357
        %v1484 = vpop.f32.mrf.mxu0
        %v1485 = vadd.f32 0.0, %v1484
        %1486 = vmatmul.f32.gmra.mxu0 %v1360
        %v1487 = vpop.f32.mrf.mxu0
        %v1488 = vadd.f32 0.0, %v1487
        %1489 = vmatmul.f32.gmra.mxu0 %v1363
        %v1490 = vpop.f32.mrf.mxu0
        %v1491 = vadd.f32 0.0, %v1490
        %1492 = vmatmul.f32.gmra.mxu0 %v1366
        %v1493 = vpop.f32.mrf.mxu0
        %v1494 = vadd.f32 0.0, %v1493
        %1495 = vmatmul.f32.gmra.mxu0 %v1369
        %v1496 = vpop.f32.mrf.mxu0
        %v1497 = vadd.f32 0.0, %v1496
        %1498 = vdwg.mxu0
        %v1499 = vmul.f32 %v1389, %v1389
        %v1500 = vmul.f32 %v1421, %v1421
        %v1501 = vmul.f32 %v1453, %v1453
        %v1502 = vmul.f32 %v1485, %v1485
        %v1503 = vmul.f32 %v1392, %v1392
        %v1504 = vmul.f32 %v1424, %v1424
        %v1505 = vmul.f32 %v1456, %v1456
        %v1506 = vmul.f32 %v1488, %v1488
        %v1507 = vmul.f32 %v1395, %v1395
        %v1508 = vmul.f32 %v1427, %v1427
        %v1509 = vmul.f32 %v1459, %v1459
        %v1510 = vmul.f32 %v1491, %v1491
        %v1511 = vmul.f32 %v1398, %v1398
        %v1512 = vmul.f32 %v1430, %v1430
        %v1513 = vmul.f32 %v1462, %v1462
        %v1514 = vmul.f32 %v1494, %v1494
        %v1515 = vmul.f32 %v1401, %v1401
        %v1516 = vmul.f32 %v1433, %v1433
        %v1517 = vmul.f32 %v1465, %v1465
        %v1518 = vmul.f32 %v1497, %v1497
        %v1520 = vsel %vm362, %v270, 0
        %v1523 = vsel %vm362, %v271, 0
        %v1526 = vsel %vm362, %v272, 0
        %v1529 = vsel %vm362, %v273, 0
        %v1532 = vsel %vm362, %v274, 0
        %1534 = vmatpush.msra.mxu0 0.0
        %1535 = vmatpush.msra.mxu0 0.0
        %1536 = vmatpush.msra.mxu0 0.0
        %1537 = vmatpush.msra.mxu0 0.0
        %1538 = vmatpush.msra.mxu0 0.0
        %1539 = vmatpush.msra.mxu0 0.0
        %1540 = vmatpush.msra.mxu0 0.0
        %1541 = vmatpush.msra.mxu0 0.0
        %1542 = vmatpush.msra.mxu0 0.0
        %1543 = vmatpush.msra.mxu0 0.0
        %1544 = vmatpush.msra.mxu0 0.0
        %1545 = vmatpush.msra.mxu0 %v1515
        %1546 = vmatpush.msra.mxu0 %v1511
        %1547 = vmatpush.msra.mxu0 %v1507
        %1548 = vmatpush.msra.mxu0 %v1503
        %1549 = vmatpush.msra.mxu0 %v1499
        %1550 = vmatmul.f32.gmra.mxu0 %v1520
        %v1551 = vpop.f32.mrf.mxu0
        %v1552 = vadd.f32 1e-05, %v1551
        %1553 = vmatmul.f32.gmra.mxu0 %v1523
        %v1554 = vpop.f32.mrf.mxu0
        %v1555 = vadd.f32 1e-05, %v1554
        %1556 = vmatmul.f32.gmra.mxu0 %v1526
        %v1557 = vpop.f32.mrf.mxu0
        %v1558 = vadd.f32 1e-05, %v1557
        %1559 = vmatmul.f32.gmra.mxu0 %v1529
        %v1560 = vpop.f32.mrf.mxu0
        %v1561 = vadd.f32 1e-05, %v1560
        %1562 = vmatmul.f32.gmra.mxu0 %v1532
        %v1563 = vpop.f32.mrf.mxu0
        %v1564 = vadd.f32 1e-05, %v1563
        %1565 = vdwg.mxu0
        %1566 = vmatpush.msra.mxu0 0.0
        %1567 = vmatpush.msra.mxu0 0.0
        %1568 = vmatpush.msra.mxu0 0.0
        %1569 = vmatpush.msra.mxu0 0.0
        %1570 = vmatpush.msra.mxu0 0.0
        %1571 = vmatpush.msra.mxu0 0.0
        %1572 = vmatpush.msra.mxu0 0.0
        %1573 = vmatpush.msra.mxu0 0.0
        %1574 = vmatpush.msra.mxu0 0.0
        %1575 = vmatpush.msra.mxu0 0.0
        %1576 = vmatpush.msra.mxu0 0.0
        %1577 = vmatpush.msra.mxu0 %v1516
        %1578 = vmatpush.msra.mxu0 %v1512
        %1579 = vmatpush.msra.mxu0 %v1508
        %1580 = vmatpush.msra.mxu0 %v1504
        %1581 = vmatpush.msra.mxu0 %v1500
        %1582 = vmatmul.f32.gmra.mxu0 %v1520
        %v1583 = vpop.f32.mrf.mxu0
        %v1584 = vadd.f32 1e-05, %v1583
        %1585 = vmatmul.f32.gmra.mxu0 %v1523
        %v1586 = vpop.f32.mrf.mxu0
        %v1587 = vadd.f32 1e-05, %v1586
        %1588 = vmatmul.f32.gmra.mxu0 %v1526
        %v1589 = vpop.f32.mrf.mxu0
        %v1590 = vadd.f32 1e-05, %v1589
        %1591 = vmatmul.f32.gmra.mxu0 %v1529
        %v1592 = vpop.f32.mrf.mxu0
        %v1593 = vadd.f32 1e-05, %v1592
        %1594 = vmatmul.f32.gmra.mxu0 %v1532
        %v1595 = vpop.f32.mrf.mxu0
        %v1596 = vadd.f32 1e-05, %v1595
        %1597 = vdwg.mxu0
        %1598 = vmatpush.msra.mxu0 0.0
        %1599 = vmatpush.msra.mxu0 0.0
        %1600 = vmatpush.msra.mxu0 0.0
        %1601 = vmatpush.msra.mxu0 0.0
        %1602 = vmatpush.msra.mxu0 0.0
        %1603 = vmatpush.msra.mxu0 0.0
        %1604 = vmatpush.msra.mxu0 0.0
        %1605 = vmatpush.msra.mxu0 0.0
        %1606 = vmatpush.msra.mxu0 0.0
        %1607 = vmatpush.msra.mxu0 0.0
        %1608 = vmatpush.msra.mxu0 0.0
        %1609 = vmatpush.msra.mxu0 %v1517
        %1610 = vmatpush.msra.mxu0 %v1513
        %1611 = vmatpush.msra.mxu0 %v1509
        %1612 = vmatpush.msra.mxu0 %v1505
        %1613 = vmatpush.msra.mxu0 %v1501
        %1614 = vmatmul.f32.gmra.mxu0 %v1520
        %v1615 = vpop.f32.mrf.mxu0
        %v1616 = vadd.f32 1e-05, %v1615
        %1617 = vmatmul.f32.gmra.mxu0 %v1523
        %v1618 = vpop.f32.mrf.mxu0
        %v1619 = vadd.f32 1e-05, %v1618
        %1620 = vmatmul.f32.gmra.mxu0 %v1526
        %v1621 = vpop.f32.mrf.mxu0
        %v1622 = vadd.f32 1e-05, %v1621
        %1623 = vmatmul.f32.gmra.mxu0 %v1529
        %v1624 = vpop.f32.mrf.mxu0
        %v1625 = vadd.f32 1e-05, %v1624
        %1626 = vmatmul.f32.gmra.mxu0 %v1532
        %v1627 = vpop.f32.mrf.mxu0
        %v1628 = vadd.f32 1e-05, %v1627
        %1629 = vdwg.mxu0
        %1630 = vmatpush.msra.mxu0 0.0
        %1631 = vmatpush.msra.mxu0 0.0
        %1632 = vmatpush.msra.mxu0 0.0
        %1633 = vmatpush.msra.mxu0 0.0
        %1634 = vmatpush.msra.mxu0 0.0
        %1635 = vmatpush.msra.mxu0 0.0
        %1636 = vmatpush.msra.mxu0 0.0
        %1637 = vmatpush.msra.mxu0 0.0
        %1638 = vmatpush.msra.mxu0 0.0
        %1639 = vmatpush.msra.mxu0 0.0
        %1640 = vmatpush.msra.mxu0 0.0
        %1641 = vmatpush.msra.mxu0 %v1518
        %1642 = vmatpush.msra.mxu0 %v1514
        %1643 = vmatpush.msra.mxu0 %v1510
        %1644 = vmatpush.msra.mxu0 %v1506
        %1645 = vmatpush.msra.mxu0 %v1502
        %1646 = vmatmul.f32.gmra.mxu0 %v1520
        %v1647 = vpop.f32.mrf.mxu0
        %v1648 = vadd.f32 1e-05, %v1647
        %1649 = vmatmul.f32.gmra.mxu0 %v1523
        %v1650 = vpop.f32.mrf.mxu0
        %v1651 = vadd.f32 1e-05, %v1650
        %1652 = vmatmul.f32.gmra.mxu0 %v1526
        %v1653 = vpop.f32.mrf.mxu0
        %v1654 = vadd.f32 1e-05, %v1653
        %1655 = vmatmul.f32.gmra.mxu0 %v1529
        %v1656 = vpop.f32.mrf.mxu0
        %v1657 = vadd.f32 1e-05, %v1656
        %1658 = vmatmul.f32.gmra.mxu0 %v1532
        %v1659 = vpop.f32.mrf.mxu0
        %v1660 = vadd.f32 1e-05, %v1659
        %1661 = vdwg.mxu0
        %v1662 = vrsqrt.pop %v1552
        %v1663 = vmul.f32 %v1662, %v1552
        %v1664 = vmul.f32 %v1663, %v1662
        %v1665 = vmul.f32 0.5, %v1664
        %v1666 = vsub.f32 1.5, %v1665
        %v1667 = vmul.f32 %v1662, %v1666
        %vm1668 = vweird.f32 %v1552
        %vm1669 = vweird.f32 %v1662
        %vm1670 = vmor %vm1668, %vm1669
        %v1671 = vsel %vm1670, %v1662, %v1667
        %v1672 = vrsqrt.pop %v1584
        %v1673 = vmul.f32 %v1672, %v1584
        %v1674 = vmul.f32 %v1673, %v1672
        %v1675 = vmul.f32 0.5, %v1674
        %v1676 = vsub.f32 1.5, %v1675
        %v1677 = vmul.f32 %v1672, %v1676
        %vm1678 = vweird.f32 %v1584
        %vm1679 = vweird.f32 %v1672
        %vm1680 = vmor %vm1678, %vm1679
        %v1681 = vsel %vm1680, %v1672, %v1677
        %v1682 = vrsqrt.pop %v1616
        %v1683 = vmul.f32 %v1682, %v1616
        %v1684 = vmul.f32 %v1683, %v1682
        %v1685 = vmul.f32 0.5, %v1684
        %v1686 = vsub.f32 1.5, %v1685
        %v1687 = vmul.f32 %v1682, %v1686
        %vm1688 = vweird.f32 %v1616
        %vm1689 = vweird.f32 %v1682
        %vm1690 = vmor %vm1688, %vm1689
        %v1691 = vsel %vm1690, %v1682, %v1687
        %v1692 = vrsqrt.pop %v1648
        %v1693 = vmul.f32 %v1692, %v1648
        %v1694 = vmul.f32 %v1693, %v1692
        %v1695 = vmul.f32 0.5, %v1694
        %v1696 = vsub.f32 1.5, %v1695
        %v1697 = vmul.f32 %v1692, %v1696
        %vm1698 = vweird.f32 %v1648
        %vm1699 = vweird.f32 %v1692
        %vm1700 = vmor %vm1698, %vm1699
        %v1701 = vsel %vm1700, %v1692, %v1697
        %v1702 = vrsqrt.pop %v1555
        %v1703 = vmul.f32 %v1702, %v1555
        %v1704 = vmul.f32 %v1703, %v1702
        %v1705 = vmul.f32 0.5, %v1704
        %v1706 = vsub.f32 1.5, %v1705
        %v1707 = vmul.f32 %v1702, %v1706
        %vm1708 = vweird.f32 %v1555
        %vm1709 = vweird.f32 %v1702
        %vm1710 = vmor %vm1708, %vm1709
        %v1711 = vsel %vm1710, %v1702, %v1707
        %v1712 = vrsqrt.pop %v1587
        %v1713 = vmul.f32 %v1712, %v1587
        %v1714 = vmul.f32 %v1713, %v1712
        %v1715 = vmul.f32 0.5, %v1714
        %v1716 = vsub.f32 1.5, %v1715
        %v1717 = vmul.f32 %v1712, %v1716
        %vm1718 = vweird.f32 %v1587
        %vm1719 = vweird.f32 %v1712
        %vm1720 = vmor %vm1718, %vm1719
        %v1721 = vsel %vm1720, %v1712, %v1717
        %v1722 = vrsqrt.pop %v1619
        %v1723 = vmul.f32 %v1722, %v1619
        %v1724 = vmul.f32 %v1723, %v1722
        %v1725 = vmul.f32 0.5, %v1724
        %v1726 = vsub.f32 1.5, %v1725
        %v1727 = vmul.f32 %v1722, %v1726
        %vm1728 = vweird.f32 %v1619
        %vm1729 = vweird.f32 %v1722
        %vm1730 = vmor %vm1728, %vm1729
        %v1731 = vsel %vm1730, %v1722, %v1727
        %v1732 = vrsqrt.pop %v1651
        %v1733 = vmul.f32 %v1732, %v1651
        %v1734 = vmul.f32 %v1733, %v1732
        %v1735 = vmul.f32 0.5, %v1734
        %v1736 = vsub.f32 1.5, %v1735
        %v1737 = vmul.f32 %v1732, %v1736
        %vm1738 = vweird.f32 %v1651
        %vm1739 = vweird.f32 %v1732
        %vm1740 = vmor %vm1738, %vm1739
        %v1741 = vsel %vm1740, %v1732, %v1737
        %v1742 = vrsqrt.pop %v1558
        %v1743 = vmul.f32 %v1742, %v1558
        %v1744 = vmul.f32 %v1743, %v1742
        %v1745 = vmul.f32 0.5, %v1744
        %v1746 = vsub.f32 1.5, %v1745
        %v1747 = vmul.f32 %v1742, %v1746
        %vm1748 = vweird.f32 %v1558
        %vm1749 = vweird.f32 %v1742
        %vm1750 = vmor %vm1748, %vm1749
        %v1751 = vsel %vm1750, %v1742, %v1747
        %v1752 = vrsqrt.pop %v1590
        %v1753 = vmul.f32 %v1752, %v1590
        %v1754 = vmul.f32 %v1753, %v1752
        %v1755 = vmul.f32 0.5, %v1754
        %v1756 = vsub.f32 1.5, %v1755
        %v1757 = vmul.f32 %v1752, %v1756
        %vm1758 = vweird.f32 %v1590
        %vm1759 = vweird.f32 %v1752
        %vm1760 = vmor %vm1758, %vm1759
        %v1761 = vsel %vm1760, %v1752, %v1757
        %v1762 = vrsqrt.pop %v1622
        %v1763 = vmul.f32 %v1762, %v1622
        %v1764 = vmul.f32 %v1763, %v1762
        %v1765 = vmul.f32 0.5, %v1764
        %v1766 = vsub.f32 1.5, %v1765
        %v1767 = vmul.f32 %v1762, %v1766
        %vm1768 = vweird.f32 %v1622
        %vm1769 = vweird.f32 %v1762
        %vm1770 = vmor %vm1768, %vm1769
        %v1771 = vsel %vm1770, %v1762, %v1767
        %v1772 = vrsqrt.pop %v1654
        %v1773 = vmul.f32 %v1772, %v1654
        %v1774 = vmul.f32 %v1773, %v1772
        %v1775 = vmul.f32 0.5, %v1774
        %v1776 = vsub.f32 1.5, %v1775
        %v1777 = vmul.f32 %v1772, %v1776
        %vm1778 = vweird.f32 %v1654
        %vm1779 = vweird.f32 %v1772
        %vm1780 = vmor %vm1778, %vm1779
        %v1781 = vsel %vm1780, %v1772, %v1777
        %v1782 = vrsqrt.pop %v1561
        %v1783 = vmul.f32 %v1782, %v1561
        %v1784 = vmul.f32 %v1783, %v1782
        %v1785 = vmul.f32 0.5, %v1784
        %v1786 = vsub.f32 1.5, %v1785
        %v1787 = vmul.f32 %v1782, %v1786
        %vm1788 = vweird.f32 %v1561
        %vm1789 = vweird.f32 %v1782
        %vm1790 = vmor %vm1788, %vm1789
        %v1791 = vsel %vm1790, %v1782, %v1787
        %v1792 = vrsqrt.pop %v1593
        %v1793 = vmul.f32 %v1792, %v1593
        %v1794 = vmul.f32 %v1793, %v1792
        %v1795 = vmul.f32 0.5, %v1794
        %v1796 = vsub.f32 1.5, %v1795
        %v1797 = vmul.f32 %v1792, %v1796
        %vm1798 = vweird.f32 %v1593
        %vm1799 = vweird.f32 %v1792
        %vm1800 = vmor %vm1798, %vm1799
        %v1801 = vsel %vm1800, %v1792, %v1797
        %v1802 = vrsqrt.pop %v1625
        %v1803 = vmul.f32 %v1802, %v1625
        %v1804 = vmul.f32 %v1803, %v1802
        %v1805 = vmul.f32 0.5, %v1804
        %v1806 = vsub.f32 1.5, %v1805
        %v1807 = vmul.f32 %v1802, %v1806
        %vm1808 = vweird.f32 %v1625
        %vm1809 = vweird.f32 %v1802
        %vm1810 = vmor %vm1808, %vm1809
        %v1811 = vsel %vm1810, %v1802, %v1807
        %v1812 = vrsqrt.pop %v1657
        %v1813 = vmul.f32 %v1812, %v1657
        %v1814 = vmul.f32 %v1813, %v1812
        %v1815 = vmul.f32 0.5, %v1814
        %v1816 = vsub.f32 1.5, %v1815
        %v1817 = vmul.f32 %v1812, %v1816
        %vm1818 = vweird.f32 %v1657
        %vm1819 = vweird.f32 %v1812
        %vm1820 = vmor %vm1818, %vm1819
        %v1821 = vsel %vm1820, %v1812, %v1817
        %v1822 = vrsqrt.pop %v1564
        %v1823 = vmul.f32 %v1822, %v1564
        %v1824 = vmul.f32 %v1823, %v1822
        %v1825 = vmul.f32 0.5, %v1824
        %v1826 = vsub.f32 1.5, %v1825
        %v1827 = vmul.f32 %v1822, %v1826
        %vm1828 = vweird.f32 %v1564
        %vm1829 = vweird.f32 %v1822
        %vm1830 = vmor %vm1828, %vm1829
        %v1831 = vsel %vm1830, %v1822, %v1827
        %v1832 = vrsqrt.pop %v1596
        %v1833 = vmul.f32 %v1832, %v1596
        %v1834 = vmul.f32 %v1833, %v1832
        %v1835 = vmul.f32 0.5, %v1834
        %v1836 = vsub.f32 1.5, %v1835
        %v1837 = vmul.f32 %v1832, %v1836
        %vm1838 = vweird.f32 %v1596
        %vm1839 = vweird.f32 %v1832
        %vm1840 = vmor %vm1838, %vm1839
        %v1841 = vsel %vm1840, %v1832, %v1837
        %v1842 = vrsqrt.pop %v1628
        %v1843 = vmul.f32 %v1842, %v1628
        %v1844 = vmul.f32 %v1843, %v1842
        %v1845 = vmul.f32 0.5, %v1844
        %v1846 = vsub.f32 1.5, %v1845
        %v1847 = vmul.f32 %v1842, %v1846
        %vm1848 = vweird.f32 %v1628
        %vm1849 = vweird.f32 %v1842
        %vm1850 = vmor %vm1848, %vm1849
        %v1851 = vsel %vm1850, %v1842, %v1847
        %v1852 = vrsqrt.pop %v1660
        %v1853 = vmul.f32 %v1852, %v1660
        %v1854 = vmul.f32 %v1853, %v1852
        %v1855 = vmul.f32 0.5, %v1854
        %v1856 = vsub.f32 1.5, %v1855
        %v1857 = vmul.f32 %v1852, %v1856
        %vm1858 = vweird.f32 %v1660
        %vm1859 = vweird.f32 %v1852
        %vm1860 = vmor %vm1858, %vm1859
        %v1861 = vsel %vm1860, %v1852, %v1857
        %v1862 = vmul.f32 %v1389, %v1671
        %v1863 = vmul.f32 %v1421, %v1681
        %v1864 = vmul.f32 %v1453, %v1691
        %v1865 = vmul.f32 %v1485, %v1701
        %v1866 = vmul.f32 %v1392, %v1711
        %v1867 = vmul.f32 %v1424, %v1721
        %v1868 = vmul.f32 %v1456, %v1731
        %v1869 = vmul.f32 %v1488, %v1741
        %v1870 = vmul.f32 %v1395, %v1751
        %v1871 = vmul.f32 %v1427, %v1761
        %v1872 = vmul.f32 %v1459, %v1771
        %v1873 = vmul.f32 %v1491, %v1781
        %v1874 = vmul.f32 %v1398, %v1791
        %v1875 = vmul.f32 %v1430, %v1801
        %v1876 = vmul.f32 %v1462, %v1811
        %v1877 = vmul.f32 %v1494, %v1821
        %v1878 = vmul.f32 %v1401, %v1831
        %v1879 = vmul.f32 %v1433, %v1841
        %v1880 = vmul.f32 %v1465, %v1851
        %v1881 = vmul.f32 %v1497, %v1861
        %1883 = vset.pattern.permute.xlu0 0
        %1884 = vperm.xlu0 %1883, %v294
        %v1885 = vpop.permute.xlu0 %1884
        %1888 = vset.pattern.permute.xlu0 0
        %1889 = vperm.xlu0 %1888, %v295
        %v1890 = vpop.permute.xlu0 %1889
        %1893 = vset.pattern.permute.xlu0 0
        %1894 = vperm.xlu0 %1893, %v296
        %v1895 = vpop.permute.xlu0 %1894
        %1898 = vset.pattern.permute.xlu0 0
        %1899 = vperm.xlu0 %1898, %v297
        %v1900 = vpop.permute.xlu0 %1899
        %1903 = vset.pattern.permute.xlu0 0
        %1904 = vperm.xlu0 %1903, %v298
        %v1905 = vpop.permute.xlu0 %1904
        %v1907 = vmul.f32 %v1862, %v1885
        %v1908 = vmul.f32 %v1863, %v1885
        %v1909 = vmul.f32 %v1864, %v1885
        %v1910 = vmul.f32 %v1865, %v1885
        %v1911 = vmul.f32 %v1866, %v1890
        %v1912 = vmul.f32 %v1867, %v1890
        %v1913 = vmul.f32 %v1868, %v1890
        %v1914 = vmul.f32 %v1869, %v1890
        %v1915 = vmul.f32 %v1870, %v1895
        %v1916 = vmul.f32 %v1871, %v1895
        %v1917 = vmul.f32 %v1872, %v1895
        %v1918 = vmul.f32 %v1873, %v1895
        %v1919 = vmul.f32 %v1874, %v1900
        %v1920 = vmul.f32 %v1875, %v1900
        %v1921 = vmul.f32 %v1876, %v1900
        %v1922 = vmul.f32 %v1877, %v1900
        %v1923 = vmul.f32 %v1878, %v1905
        %v1924 = vmul.f32 %v1879, %v1905
        %v1925 = vmul.f32 %v1880, %v1905
        %v1926 = vmul.f32 %v1881, %v1905
        %1928 = vset.pattern.permute.xlu0 0
        %1929 = vperm.xlu0 %1928, %v299
        %v1930 = vpop.permute.xlu0 %1929
        %1933 = vset.pattern.permute.xlu0 0
        %1934 = vperm.xlu0 %1933, %v300
        %v1935 = vpop.permute.xlu0 %1934
        %1938 = vset.pattern.permute.xlu0 0
        %1939 = vperm.xlu0 %1938, %v301
        %v1940 = vpop.permute.xlu0 %1939
        %1943 = vset.pattern.permute.xlu0 0
        %1944 = vperm.xlu0 %1943, %v302
        %v1945 = vpop.permute.xlu0 %1944
        %1948 = vset.pattern.permute.xlu0 0
        %1949 = vperm.xlu0 %1948, %v303
        %v1950 = vpop.permute.xlu0 %1949
        %v1952 = vadd.f32 %v1907, %v1930
        %v1953 = vadd.f32 %v1908, %v1930
        %v1954 = vadd.f32 %v1909, %v1930
        %v1955 = vadd.f32 %v1910, %v1930
        %v1956 = vadd.f32 %v1911, %v1935
        %v1957 = vadd.f32 %v1912, %v1935
        %v1958 = vadd.f32 %v1913, %v1935
        %v1959 = vadd.f32 %v1914, %v1935
        %v1960 = vadd.f32 %v1915, %v1940
        %v1961 = vadd.f32 %v1916, %v1940
        %v1962 = vadd.f32 %v1917, %v1940
        %v1963 = vadd.f32 %v1918, %v1940
        %v1964 = vadd.f32 %v1919, %v1945
        %v1965 = vadd.f32 %v1920, %v1945
        %v1966 = vadd.f32 %v1921, %v1945
        %v1967 = vadd.f32 %v1922, %v1945
        %v1968 = vadd.f32 %v1923, %v1950
        %v1969 = vadd.f32 %v1924, %v1950
        %v1970 = vadd.f32 %v1925, %v1950
        %v1971 = vadd.f32 %v1926, %v1950
        %1973 = vset.pattern.permute.xlu0 0
        %1974 = vperm.xlu0 %1973, %v304
        %v1975 = vpop.permute.xlu0 %1974
        %1978 = vset.pattern.permute.xlu0 0
        %1979 = vperm.xlu0 %1978, %v305
        %v1980 = vpop.permute.xlu0 %1979
        %v1983 = vsel %vm362, %v275, 0
        %v1986 = vsel %vm362, %v276, 0
        %1988 = vmatpush.msra.mxu0 0.0
        %1989 = vmatpush.msra.mxu0 0.0
        %1990 = vmatpush.msra.mxu0 0.0
        %1991 = vmatpush.msra.mxu0 0.0
        %1992 = vmatpush.msra.mxu0 0.0
        %1993 = vmatpush.msra.mxu0 0.0
        %1994 = vmatpush.msra.mxu0 0.0
        %1995 = vmatpush.msra.mxu0 0.0
        %1996 = vmatpush.msra.mxu0 0.0
        %1997 = vmatpush.msra.mxu0 0.0
        %1998 = vmatpush.msra.mxu0 0.0
        %1999 = vmatpush.msra.mxu0 %v1968
        %2000 = vmatpush.msra.mxu0 %v1964
        %2001 = vmatpush.msra.mxu0 %v1960
        %2002 = vmatpush.msra.mxu0 %v1956
        %2003 = vmatpush.msra.mxu0 %v1952
        %2004 = vmatmul.f32.gmra.mxu0 %v1983
        %v2005 = vpop.f32.mrf.mxu0
        %v2006 = vadd.f32 %v1975, %v2005
        %2007 = vmatmul.f32.gmra.mxu0 %v1986
        %v2008 = vpop.f32.mrf.mxu0
        %v2009 = vadd.f32 %v1980, %v2008
        %2010 = vdwg.mxu0
        %2011 = vmatpush.msra.mxu0 0.0
        %2012 = vmatpush.msra.mxu0 0.0
        %2013 = vmatpush.msra.mxu0 0.0
        %2014 = vmatpush.msra.mxu0 0.0
        %2015 = vmatpush.msra.mxu0 0.0
        %2016 = vmatpush.msra.mxu0 0.0
        %2017 = vmatpush.msra.mxu0 0.0
        %2018 = vmatpush.msra.mxu0 0.0
        %2019 = vmatpush.msra.mxu0 0.0
        %2020 = vmatpush.msra.mxu0 0.0
        %2021 = vmatpush.msra.mxu0 0.0
        %2022 = vmatpush.msra.mxu0 %v1969
        %2023 = vmatpush.msra.mxu0 %v1965
        %2024 = vmatpush.msra.mxu0 %v1961
        %2025 = vmatpush.msra.mxu0 %v1957
        %2026 = vmatpush.msra.mxu0 %v1953
        %2027 = vmatmul.f32.gmra.mxu0 %v1983
        %v2028 = vpop.f32.mrf.mxu0
        %v2029 = vadd.f32 %v1975, %v2028
        %2030 = vmatmul.f32.gmra.mxu0 %v1986
        %v2031 = vpop.f32.mrf.mxu0
        %v2032 = vadd.f32 %v1980, %v2031
        %2033 = vdwg.mxu0
        %2034 = vmatpush.msra.mxu0 0.0
        %2035 = vmatpush.msra.mxu0 0.0
        %2036 = vmatpush.msra.mxu0 0.0
        %2037 = vmatpush.msra.mxu0 0.0
        %2038 = vmatpush.msra.mxu0 0.0
        %2039 = vmatpush.msra.mxu0 0.0
        %2040 = vmatpush.msra.mxu0 0.0
        %2041 = vmatpush.msra.mxu0 0.0
        %2042 = vmatpush.msra.mxu0 0.0
        %2043 = vmatpush.msra.mxu0 0.0
        %2044 = vmatpush.msra.mxu0 0.0
        %2045 = vmatpush.msra.mxu0 %v1970
        %2046 = vmatpush.msra.mxu0 %v1966
        %2047 = vmatpush.msra.mxu0 %v1962
        %2048 = vmatpush.msra.mxu0 %v1958
        %2049 = vmatpush.msra.mxu0 %v1954
        %2050 = vmatmul.f32.gmra.mxu0 %v1983
        %v2051 = vpop.f32.mrf.mxu0
        %v2052 = vadd.f32 %v1975, %v2051
        %2053 = vmatmul.f32.gmra.mxu0 %v1986
        %v2054 = vpop.f32.mrf.mxu0
        %v2055 = vadd.f32 %v1980, %v2054
        %2056 = vdwg.mxu0
        %2057 = vmatpush.msra.mxu0 0.0
        %2058 = vmatpush.msra.mxu0 0.0
        %2059 = vmatpush.msra.mxu0 0.0
        %2060 = vmatpush.msra.mxu0 0.0
        %2061 = vmatpush.msra.mxu0 0.0
        %2062 = vmatpush.msra.mxu0 0.0
        %2063 = vmatpush.msra.mxu0 0.0
        %2064 = vmatpush.msra.mxu0 0.0
        %2065 = vmatpush.msra.mxu0 0.0
        %2066 = vmatpush.msra.mxu0 0.0
        %2067 = vmatpush.msra.mxu0 0.0
        %2068 = vmatpush.msra.mxu0 %v1971
        %2069 = vmatpush.msra.mxu0 %v1967
        %2070 = vmatpush.msra.mxu0 %v1963
        %2071 = vmatpush.msra.mxu0 %v1959
        %2072 = vmatpush.msra.mxu0 %v1955
        %2073 = vmatmul.f32.gmra.mxu0 %v1983
        %v2074 = vpop.f32.mrf.mxu0
        %v2075 = vadd.f32 %v1975, %v2074
        %2076 = vmatmul.f32.gmra.mxu0 %v1986
        %v2077 = vpop.f32.mrf.mxu0
        %v2078 = vadd.f32 %v1980, %v2077
        %2079 = vdwg.mxu0
        %v2080 = vtanh.pop %v2006
        %v2081 = vtanh.pop %v2029
        %v2082 = vtanh.pop %v2052
        %v2083 = vtanh.pop %v2075
        %v2084 = vtanh.pop %v2009
        %v2085 = vtanh.pop %v2032
        %v2086 = vtanh.pop %v2055
        %v2087 = vtanh.pop %v2078
        %2089 = vset.pattern.permute.xlu0 0
        %2090 = vperm.xlu0 %2089, %v306
        %v2091 = vpop.permute.xlu0 %2090
        %vm2093 = vcmask 80896
        %v2095 = vsel %vm2093, %v277, 0
        %vm2097 = vcmask 1041408
        %v2099 = vsel %vm2097, %v2084, 0
        %v2102 = vsel %vm2097, %v2085, 0
        %v2105 = vsel %vm2097, %v2086, 0
        %v2108 = vsel %vm2097, %v2087, 0
        %2110 = vmatpush.msra.mxu0 0.0
        %2111 = vmatpush.msra.mxu0 0.0
        %2112 = vmatpush.msra.mxu0 0.0
        %2113 = vmatpush.msra.mxu0 0.0
        %2114 = vmatpush.msra.mxu0 0.0
        %2115 = vmatpush.msra.mxu0 0.0
        %2116 = vmatpush.msra.mxu0 0.0
        %2117 = vmatpush.msra.mxu0 0.0
        %2118 = vmatpush.msra.mxu0 0.0
        %2119 = vmatpush.msra.mxu0 0.0
        %2120 = vmatpush.msra.mxu0 0.0
        %2121 = vmatpush.msra.mxu0 0.0
        %2122 = vmatpush.msra.mxu0 0.0
        %2123 = vmatpush.msra.mxu0 0.0
        %2124 = vmatpush.msra.mxu0 %v2099
        %2125 = vmatpush.msra.mxu0 %v2080
        %2126 = vmatmul.f32.gmra.mxu0 %v2095
        %v2127 = vpop.f32.mrf.mxu0
        %v2128 = vadd.f32 %v2091, %v2127
        %2129 = vdwg.mxu0
        %2130 = vmatpush.msra.mxu0 0.0
        %2131 = vmatpush.msra.mxu0 0.0
        %2132 = vmatpush.msra.mxu0 0.0
        %2133 = vmatpush.msra.mxu0 0.0
        %2134 = vmatpush.msra.mxu0 0.0
        %2135 = vmatpush.msra.mxu0 0.0
        %2136 = vmatpush.msra.mxu0 0.0
        %2137 = vmatpush.msra.mxu0 0.0
        %2138 = vmatpush.msra.mxu0 0.0
        %2139 = vmatpush.msra.mxu0 0.0
        %2140 = vmatpush.msra.mxu0 0.0
        %2141 = vmatpush.msra.mxu0 0.0
        %2142 = vmatpush.msra.mxu0 0.0
        %2143 = vmatpush.msra.mxu0 0.0
        %2144 = vmatpush.msra.mxu0 %v2102
        %2145 = vmatpush.msra.mxu0 %v2081
        %2146 = vmatmul.f32.gmra.mxu0 %v2095
        %v2147 = vpop.f32.mrf.mxu0
        %v2148 = vadd.f32 %v2091, %v2147
        %2149 = vdwg.mxu0
        %2150 = vmatpush.msra.mxu0 0.0
        %2151 = vmatpush.msra.mxu0 0.0
        %2152 = vmatpush.msra.mxu0 0.0
        %2153 = vmatpush.msra.mxu0 0.0
        %2154 = vmatpush.msra.mxu0 0.0
        %2155 = vmatpush.msra.mxu0 0.0
        %2156 = vmatpush.msra.mxu0 0.0
        %2157 = vmatpush.msra.mxu0 0.0
        %2158 = vmatpush.msra.mxu0 0.0
        %2159 = vmatpush.msra.mxu0 0.0
        %2160 = vmatpush.msra.mxu0 0.0
        %2161 = vmatpush.msra.mxu0 0.0
        %2162 = vmatpush.msra.mxu0 0.0
        %2163 = vmatpush.msra.mxu0 0.0
        %2164 = vmatpush.msra.mxu0 %v2105
        %2165 = vmatpush.msra.mxu0 %v2082
        %2166 = vmatmul.f32.gmra.mxu0 %v2095
        %v2167 = vpop.f32.mrf.mxu0
        %v2168 = vadd.f32 %v2091, %v2167
        %2169 = vdwg.mxu0
        %2170 = vmatpush.msra.mxu0 0.0
        %2171 = vmatpush.msra.mxu0 0.0
        %2172 = vmatpush.msra.mxu0 0.0
        %2173 = vmatpush.msra.mxu0 0.0
        %2174 = vmatpush.msra.mxu0 0.0
        %2175 = vmatpush.msra.mxu0 0.0
        %2176 = vmatpush.msra.mxu0 0.0
        %2177 = vmatpush.msra.mxu0 0.0
        %2178 = vmatpush.msra.mxu0 0.0
        %2179 = vmatpush.msra.mxu0 0.0
        %2180 = vmatpush.msra.mxu0 0.0
        %2181 = vmatpush.msra.mxu0 0.0
        %2182 = vmatpush.msra.mxu0 0.0
        %2183 = vmatpush.msra.mxu0 0.0
        %2184 = vmatpush.msra.mxu0 %v2108
        %2185 = vmatpush.msra.mxu0 %v2083
        %2186 = vmatmul.f32.gmra.mxu0 %v2095
        %v2187 = vpop.f32.mrf.mxu0
        %v2188 = vadd.f32 %v2091, %v2187
        %2189 = vdwg.mxu0
        %v2194 = vrot.slane %v2148, 6
        %v2195 = vrot.slane %v2168, 4
        %v2196 = vrot.slane %v2188, 2
        %v2197 = vsel %vm2097, %v2128, %v2194
        %vm2198 = vcmask 1045508
        %v2199 = vsel %vm2198, %v2195, %v2196
        %vm2200 = vcmask 1043456
        %v2201 = vsel %vm2200, %v2197, %v2199
        %2203 = vst [vmem:[%s226] sm:$0xff] %v2201
        %s2204 = sand.u32 %s93, 1
        %s2205 = scalar_lea.sflag [#allocation4], %s2204
        %s2206 = sand.u32 %s93, 1
        %s2207 = smul.addr %s2206, 8
        %s2208 = scalar_lea.vmem [#allocation3], %s2207
        // Predicated region
        $region56: #{tpu_custom_call.1} parent=50 // pred_check
          %p2209 = pneg %p103
        $region57: #{tpu_custom_call.1} parent=50 // pred_check_branch
          %2211 = sbr.rel (%p2209) target = $region59
        $region58: #{tpu_custom_call.1} parent=50 // pred_region
          %s2212 = smul.u32 4, %s17
          %2214 = vsyncadd %s2205, 0
          %s2215 = smul.addr %s2212, 2
          %s2216 = scalar_lea.hbm %s3, %s2215
          %s2218 = sshll.u32 %s2208, 4
          %s2219 = int_to_ptr.vmem [resolvable:$true] %s2218
          %s2220 = sshll.u32 %s2216, 4
          %s2221 = int_to_ptr.hbm [resolvable:$true] %s2220
          %2223 = dma.vmem_to_hbm [thread:$0]  %s2219, 128, %s2221, %s2205
        $region59: #{tpu_custom_call.1} parent=50 // pred_fallthru
          _
      $region51: #{tpu_custom_call.1} parent=5 // pred_fallthru
        _
      %p2224 = scmp.le.s32.totalorder 2, %s12
      // Predicated region
      $region60: #{tpu_custom_call.1} parent=5 // pred_check
        %p2225 = pneg %p2224
      $region61: #{tpu_custom_call.1} parent=5 // pred_check_branch
        %2227 = sbr.rel (%p2225) target = $region63
      $region62: #{tpu_custom_call.1} parent=5 // pred_region
        %s2228 = ssub.s32 %s12, 2
        // Predicated region
        $region64: #{tpu_custom_call.1} parent=62 // pred_check
          %p2229 = pneg %p109
        $region65: #{tpu_custom_call.1} parent=62 // pred_check_branch
          %2231 = sbr.rel (%p2229) target = $region67
        $region66: #{tpu_custom_call.1} parent=62 // pred_region
          %s2232 = sand.u32 %s94, 1
          %s2233 = scalar_lea.sflag [#allocation4], %s2232
          %s2234 = sand.u32 %s94, 1
          %s2235 = smul.addr %s2234, 8
          %s2236 = scalar_lea.vmem [#allocation3], %s2235
          %2238 = dma.done %s2233, 128
        $region67: #{tpu_custom_call.1} parent=62 // pred_fallthru
          _
      $region63: #{tpu_custom_call.1} parent=5 // pred_fallthru
        _
    $region6: #{tpu_custom_call.1} parent=1 // loop_footer
      %s16 = sadd.s32 1, %s12
    $region7: #{tpu_custom_call.1} parent=1 // loop_footer_branch
      %11 = sbr.rel target = $region3
    $region8: #{tpu_custom_call.1} parent=1 // loop_exit
      _
    %2239 = vsyncpa [#allocation4], 1
    %s2240 = scalar_lea.sflag [#allocation4], 1
    %2241 = vsyncpa %s2240, 1

</llo_original>
